<compile_context>
chip_gen: v5e
topology: v5e:2x2
jax: 0.10.0
libtpu: 0.0.40
codegen_flags: <defaults>
</compile_context>

<pallas_src>
import functools

import jax
import jax.numpy as jnp
from jax.experimental import pallas as pl
from jax.experimental.pallas import tpu as pltpu


def _round_up(x, m):
    return ((x + m - 1) // m) * m


def gmlfm_kernel(e_ref, fb_ref, wh_ref, w_ref, b_ref, out_ref, *,
                 num_layers, use_product, act_function):
    e = e_ref[...].astype(jnp.float32)               # (Bt, F, K)  nonzero_embed tile
    Bt, F, K = e.shape

    # --- MLP tower: (Dropout -> Linear(K,K) -> act) x num_layers ---------------
    # TODO(synk): Dropout is implemented as identity (eval-mode semantics);
    # training-mode stochastic masking is not reproduced here.
    # Single fused (Bt*F, K) @ (K, K) matmul per layer keeps the MXU M-dim tall.
    h2 = e.reshape(Bt * F, K)
    for l in range(num_layers):
        W = w_ref[l]                                 # (K, K)
        bvec = b_ref[l]                              # (1, K)
        h2 = jnp.dot(h2, W, preferred_element_type=jnp.float32) + bvec
        if act_function == 'relu':
            h2 = jnp.maximum(h2, 0.0)
        elif act_function == 'sigmoid':
            h2 = jax.nn.sigmoid(h2)
        elif act_function == 'tanh':
            h2 = jnp.tanh(h2)
    d = h2.reshape(Bt, F, K)                         # embed_deep tile

    wh = wh_ref[...].reshape(1, 1, K)                # (1, 1, K)

    # In the reference forward `relation` is an identity matrix, so
    # embed_deep.matmul(relation) == embed_deep.
    if use_product:
        we = wh * e                                                  # (Bt, F, K)
        sq = jnp.sum(d * d, axis=-1, keepdims=True)                  # (Bt, F, 1)
        e_sum = jnp.sum(e, axis=1)                                   # (Bt, K)
        t_sum = jnp.sum(we * sq, axis=1)                             # (Bt, K)
        fm1 = jnp.sum(e_sum * t_sum, axis=-1, keepdims=True)         # (Bt, 1)

        # fm2[b] = -sum_{f,g} A[b,f,g] * C[b,f,g]
        #   A[b,f,g] = sum_k d[b,f,k] * e[b,g,k]
        #   C[b,f,g] = sum_k (wh*e)[b,f,k] * d[b,g,k]
        # Unrolled over g (F is small); each step is a VPU multiply plus a
        # lane-axis (K) reduction -- no (B,K,K) intermediate, no tiny batched
        # matmuls, no transposes.
        fm2_acc = jnp.zeros((Bt, 1), jnp.float32)
        for g in range(F):
            e_g = e[:, g:g + 1, :]                                   # (Bt, 1, K)
            d_g = d[:, g:g + 1, :]                                   # (Bt, 1, K)
            a_g = jnp.sum(d * e_g, axis=-1)                          # (Bt, F) = A[:,:,g]
            c_g = jnp.sum(we * d_g, axis=-1)                         # (Bt, F) = C[:,:,g]
            fm2_acc = fm2_acc + jnp.sum(a_g * c_g, axis=-1, keepdims=True)
        fm2 = -fm2_acc                                               # (Bt, 1)
    else:
        fm1 = jnp.sum(jnp.sum(d * d, axis=-1), axis=-1,
                      keepdims=True) * float(F)                      # (Bt, 1)
        ds = jnp.sum(d, axis=1)                                      # (Bt, K)
        fm2 = -jnp.sum(ds * ds, axis=-1, keepdims=True)              # (Bt, 1)

    # fb_ref already holds sum-of-feature-biases + global bias (computed in wrapper).
    out_ref[...] = fm1 + fm2 + fb_ref[...]


def init_gmlfm_params(key, num_features, num_factors, num_layers):
    k_emb, k_wh, k_rel, k_mlp = jax.random.split(key, 4)
    return {
        'embeddings': 0.01 * jax.random.normal(
            k_emb, (num_features, num_factors), jnp.float32),
        'biases': jnp.zeros((num_features, 1), jnp.float32),
        'bias_': jnp.zeros((1,), jnp.float32),
        'w_h': 0.01 * jax.random.normal(k_wh, (num_factors,), jnp.float32),
        # `relation` parameter exists in __init__ but is unused by forward
        # (forward uses an identity matrix instead).
        'relation': 0.01 * jax.random.normal(
            k_rel, (num_factors, num_factors), jnp.float32),
        'mlp_w': 0.01 * jax.random.normal(
            k_mlp, (max(num_layers, 1), num_factors, num_factors), jnp.float32),
        'mlp_b': jnp.zeros((max(num_layers, 1), 1, num_factors), jnp.float32),
    }


def _choose_batch_tile(B, F, K, block_b):
    """Largest sublane-aligned batch tile within a ~2 MiB per-buffer VMEM budget."""
    bytes_per_row = F * K * 4
    budget = 2 * 1024 * 1024
    cap = max(8, (budget // max(bytes_per_row, 1)) // 8 * 8)
    bt = min(block_b, cap, _round_up(B, 8))
    return max(8, _round_up(bt, 8))


@functools.partial(
    jax.jit,
    static_argnames=('num_layers', 'use_product', 'act_function', 'block_b'))
def gmlfm_forward(features, feature_values, params, *,
                  num_layers, use_product, act_function, block_b=2048):
    del feature_values  # unused by the reference forward pass
    emb = params['embeddings']
    K = emb.shape[1]
    L = max(num_layers, 1)  # keep nonzero leading dim for the resident weight block

    # Embedding gathers + feature-bias reduction + global bias = glue, stays in JAX
    # (XLA fuses the gather and the tiny sum; removes a lane-sparse in-kernel reduce).
    nonzero_embed = jnp.take(emb, features, axis=0)                   # (B, F, K)
    fb = jnp.sum(jnp.take(params['biases'][:, 0], features, axis=0),
                 axis=1, keepdims=True) + params['bias_'][0]          # (B, 1)
    B, F, _ = nonzero_embed.shape

    # Batch tile: multiple of 8 (sublane-aligned (Bt,1) output store), capped by a
    # VMEM budget; pad B up to a whole number of tiles (padded rows dropped after).
    Bt = _choose_batch_tile(B, F, K, block_b)
    Bp = _round_up(B, Bt)
    if Bp != B:
        pad = Bp - B
        nonzero_embed = jnp.pad(nonzero_embed, ((0, pad), (0, 0), (0, 0)))
        fb = jnp.pad(fb, ((0, pad), (0, 0)))

    mlp_w = params['mlp_w'][:L]
    mlp_b = params['mlp_b'][:L]

    kernel = functools.partial(gmlfm_kernel, num_layers=num_layers,
                               use_product=use_product,
                               act_function=act_function)

    out = pl.pallas_call(
        kernel,
        out_shape=jax.ShapeDtypeStruct((Bp, 1), jnp.float32),
        grid=(Bp // Bt,),
        in_specs=[
            pl.BlockSpec((Bt, F, K), lambda i: (i, 0, 0)),   # embeddings tile
            pl.BlockSpec((Bt, 1), lambda i: (i, 0)),          # bias column tile
            pl.BlockSpec((1, K), lambda i: (0, 0)),            # w_h (resident)
            pl.BlockSpec((L, K, K), lambda i: (0, 0, 0)),      # MLP weights (resident)
            pl.BlockSpec((L, 1, K), lambda i: (0, 0, 0)),      # MLP biases (resident)
        ],
        out_specs=pl.BlockSpec((Bt, 1), lambda i: (i, 0)),
        compiler_params=pltpu.CompilerParams(
            dimension_semantics=("parallel",),
            vmem_limit_bytes=32 * 1024 * 1024,
        ),
    )(nonzero_embed,
      fb,
      params['w_h'].reshape(1, K),
      mlp_w,
      mlp_b)
    return out[:B, 0]                                                  # (B,)


def gmlfm_reference(features, feature_values, params, *,
                    num_layers, use_product, act_function):
    """Pure-JAX transcription of the PyTorch forward, for validation."""
    del feature_values
    emb = params['embeddings']
    K = emb.shape[1]
    e = jnp.take(emb, features, axis=0)
    h = e
    for l in range(num_layers):
        h = h @ params['mlp_w'][l] + params['mlp_b'][l][0]
        if act_function == 'relu':
            h = jnp.maximum(h, 0.0)
        elif act_function == 'sigmoid':
            h = jax.nn.sigmoid(h)
        elif act_function == 'tanh':
            h = jnp.tanh(h)
    d = h
    wh = params['w_h']
    relation = jnp.eye(K, dtype=jnp.float32)
    if use_product:
        fm1 = jnp.sum(
            jnp.sum(e, axis=1) *
            jnp.sum(wh * e * jnp.sum(d * (d @ relation), -1, keepdims=True),
                    axis=1),
            axis=-1)
        M = jnp.sum(d[:, :, None, :] * e[:, :, :, None], axis=1)
        fm2 = -jnp.sum(e * wh * jnp.einsum('bfk,bkj->bfj', d @ relation, M),
                       axis=(-1, -2))
    else:
        fm1 = jnp.sum(d * (d @ relation), axis=(-1, -2)) * d.shape[1]
        ds = jnp.sum(d, axis=1)
        fm2 = -jnp.sum(ds * (ds @ relation), axis=-1)
    feature_bias = jnp.sum(jnp.take(params['biases'][:, 0], features, axis=0),
                           axis=1)
    return (fm1 + fm2 + feature_bias + params['bias_'][0]).reshape(-1)


if __name__ == "__main__":
    # Small, forward-consistent shapes; block_b=8 exercises a multi-step grid + padding,
    # the default block_b exercises the single-tile (adaptively sized) path.
    num_features = 64     # embedding-table rows
    num_factors = 32      # K (hidden factors)
    num_fields = 8        # F: non-zero feature slots per sample
    batch = 18
    num_layers = 2
    act_function = 'relu'
    # drop_prob = 0.2 would only affect training-mode dropout (identity here).

    key = jax.random.PRNGKey(0)
    k_params, k_feat, k_val = jax.random.split(key, 3)
    params = init_gmlfm_params(k_params, num_features, num_factors, num_layers)
    features = jax.random.randint(k_feat, (batch, num_fields), 0, num_features,
                                  dtype=jnp.int32)
    feature_values = jax.random.uniform(k_val, (batch, num_fields), jnp.float32)

    for use_product in (True, False):
        for block_b in (8, 2048):
            out = gmlfm_forward(features, feature_values, params,
                                num_layers=num_layers, use_product=use_product,
                                act_function=act_function, block_b=block_b)
            out = jax.block_until_ready(out)
            ref = gmlfm_reference(features, feature_values, params,
                                  num_layers=num_layers, use_product=use_product,
                                  act_function=act_function)
            assert out.shape == (batch,), out.shape
            assert jnp.allclose(out, ref, atol=1e-6, rtol=1e-5), (
                use_product, block_b, out, ref)

    print("KERNEL_OK")
</pallas_src>

<mosaic_0001>
module attributes {stable_mosaic.version = 11 : i64} {
  func.func @gmlfm_kernel(%arg0: i32, %arg1: memref<8x8x32xf32, #tpu.memory_space<vmem>>, %arg2: memref<8x1xf32, #tpu.memory_space<vmem>>, %arg3: memref<1x32xf32, #tpu.memory_space<vmem>>, %arg4: memref<2x32x32xf32, #tpu.memory_space<vmem>>, %arg5: memref<2x1x32xf32, #tpu.memory_space<vmem>>, %arg6: memref<8x1xf32, #tpu.memory_space<vmem>>) attributes {dimension_semantics = [#tpu.dimension_semantics<parallel>], iteration_bounds = array<i64: 3>, scalar_prefetch = 0 : i64, scratch_operands = 0 : i64, tpu.core_type = #tpu.core_type<tc>, window_params = [{transform_indices = @transform_0, window_bounds = array<i64: 8, 8, 32>}, {transform_indices = @transform_1, window_bounds = array<i64: 8, 1>}, {pipeline_mode = #tpu.pipeline_mode<synchronous>, transform_indices = @transform_2, window_bounds = array<i64: 1, 32>}, {pipeline_mode = #tpu.pipeline_mode<synchronous>, transform_indices = @transform_3, window_bounds = array<i64: 2, 32, 32>}, {pipeline_mode = #tpu.pipeline_mode<synchronous>, transform_indices = @transform_4, window_bounds = array<i64: 2, 1, 32>}, {transform_indices = @transform_5, window_bounds = array<i64: 8, 1>}]} {
    %c0 = arith.constant 0 : index
    %c0_0 = arith.constant 0 : index
    %c0_1 = arith.constant 0 : index
    %0 = vector.load %arg1[%c0, %c0_0, %c0_1] : memref<8x8x32xf32, #tpu.memory_space<vmem>>, vector<8x8x32xf32>
    %1 = vector.shape_cast %0 : vector<8x8x32xf32> to vector<64x32xf32>
    %c0_2 = arith.constant 0 : index
    %c0_3 = arith.constant 0 : index
    %c0_4 = arith.constant 0 : index
    %2 = vector.load %arg4[%c0_2, %c0_3, %c0_4] : memref<2x32x32xf32, #tpu.memory_space<vmem>>, vector<1x32x32xf32>
    %3 = vector.shape_cast %2 : vector<1x32x32xf32> to vector<32x32xf32>
    %c0_5 = arith.constant 0 : index
    %c0_6 = arith.constant 0 : index
    %c0_7 = arith.constant 0 : index
    %4 = vector.load %arg5[%c0_5, %c0_6, %c0_7] : memref<2x1x32xf32, #tpu.memory_space<vmem>>, vector<1x1x32xf32>
    %5 = vector.shape_cast %4 : vector<1x1x32xf32> to vector<1x32xf32>
    %cst = arith.constant dense<0.000000e+00> : vector<64x32xf32>
    %6 = tpu.matmul %1, %3, %cst {dimension_numbers = #tpu.dot_dimension_numbers<[1], [0], [0], [1], [0, 0, 1, 1], [], []>} : vector<64x32xf32>, vector<32x32xf32>, vector<64x32xf32> -> vector<64x32xf32>
    %7 = vector.broadcast %5 : vector<1x32xf32> to vector<64x32xf32>
    %8 = arith.addf %6, %7 : vector<64x32xf32>
    %cst_8 = arith.constant 0.000000e+00 : f32
    %9 = vector.broadcast %cst_8 : f32 to vector<64x32xf32>
    %10 = arith.maximumf %8, %9 : vector<64x32xf32>
    %c1 = arith.constant 1 : index
    %c0_9 = arith.constant 0 : index
    %c0_10 = arith.constant 0 : index
    %11 = vector.load %arg4[%c1, %c0_9, %c0_10] : memref<2x32x32xf32, #tpu.memory_space<vmem>>, vector<1x32x32xf32>
    %12 = vector.shape_cast %11 : vector<1x32x32xf32> to vector<32x32xf32>
    %c1_11 = arith.constant 1 : index
    %c0_12 = arith.constant 0 : index
    %c0_13 = arith.constant 0 : index
    %13 = vector.load %arg5[%c1_11, %c0_12, %c0_13] : memref<2x1x32xf32, #tpu.memory_space<vmem>>, vector<1x1x32xf32>
    %14 = vector.shape_cast %13 : vector<1x1x32xf32> to vector<1x32xf32>
    %cst_14 = arith.constant dense<0.000000e+00> : vector<64x32xf32>
    %15 = tpu.matmul %10, %12, %cst_14 {dimension_numbers = #tpu.dot_dimension_numbers<[1], [0], [0], [1], [0, 0, 1, 1], [], []>} : vector<64x32xf32>, vector<32x32xf32>, vector<64x32xf32> -> vector<64x32xf32>
    %16 = vector.broadcast %14 : vector<1x32xf32> to vector<64x32xf32>
    %17 = arith.addf %15, %16 : vector<64x32xf32>
    %cst_15 = arith.constant 0.000000e+00 : f32
    %18 = vector.broadcast %cst_15 : f32 to vector<64x32xf32>
    %19 = arith.maximumf %17, %18 : vector<64x32xf32>
    %20 = vector.shape_cast %19 : vector<64x32xf32> to vector<8x8x32xf32>
    %c0_16 = arith.constant 0 : index
    %c0_17 = arith.constant 0 : index
    %21 = vector.load %arg3[%c0_16, %c0_17] : memref<1x32xf32, #tpu.memory_space<vmem>>, vector<1x32xf32>
    %22 = vector.shape_cast %21 : vector<1x32xf32> to vector<1x1x32xf32>
    %23 = vector.broadcast %22 : vector<1x1x32xf32> to vector<8x8x32xf32>
    %24 = arith.mulf %23, %0 : vector<8x8x32xf32>
    %25 = arith.mulf %20, %20 : vector<8x8x32xf32>
    %cst_18 = arith.constant dense<0.000000e+00> : vector<8x8xf32>
    %26 = vector.multi_reduction <add>, %25, %cst_18 [2] : vector<8x8x32xf32> to vector<8x8xf32>
    %27 = vector.shape_cast %26 : vector<8x8xf32> to vector<8x8x1xf32>
    %cst_19 = arith.constant dense<0.000000e+00> : vector<8x32xf32>
    %28 = vector.multi_reduction <add>, %0, %cst_19 [1] : vector<8x8x32xf32> to vector<8x32xf32>
    %29 = vector.broadcast %27 : vector<8x8x1xf32> to vector<8x8x32xf32>
    %30 = arith.mulf %24, %29 : vector<8x8x32xf32>
    %cst_20 = arith.constant dense<0.000000e+00> : vector<8x32xf32>
    %31 = vector.multi_reduction <add>, %30, %cst_20 [1] : vector<8x8x32xf32> to vector<8x32xf32>
    %32 = arith.mulf %28, %31 : vector<8x32xf32>
    %cst_21 = arith.constant dense<0.000000e+00> : vector<8xf32>
    %33 = vector.multi_reduction <add>, %32, %cst_21 [1] : vector<8x32xf32> to vector<8xf32>
    %34 = vector.shape_cast %33 : vector<8xf32> to vector<8x1xf32>
    %cst_22 = arith.constant 0.000000e+00 : f32
    %35 = vector.broadcast %cst_22 : f32 to vector<8x1xf32>
    %36 = vector.extract_strided_slice %0 {offsets = [0, 0, 0], sizes = [8, 1, 32], strides = [1, 1, 1]} : vector<8x8x32xf32> to vector<8x1x32xf32>
    %37 = vector.extract_strided_slice %20 {offsets = [0, 0, 0], sizes = [8, 1, 32], strides = [1, 1, 1]} : vector<8x8x32xf32> to vector<8x1x32xf32>
    %38 = vector.broadcast %36 : vector<8x1x32xf32> to vector<8x8x32xf32>
    %39 = arith.mulf %20, %38 : vector<8x8x32xf32>
    %cst_23 = arith.constant dense<0.000000e+00> : vector<8x8xf32>
    %40 = vector.multi_reduction <add>, %39, %cst_23 [2] : vector<8x8x32xf32> to vector<8x8xf32>
    %41 = vector.broadcast %37 : vector<8x1x32xf32> to vector<8x8x32xf32>
    %42 = arith.mulf %24, %41 : vector<8x8x32xf32>
    %cst_24 = arith.constant dense<0.000000e+00> : vector<8x8xf32>
    %43 = vector.multi_reduction <add>, %42, %cst_24 [2] : vector<8x8x32xf32> to vector<8x8xf32>
    %44 = arith.mulf %40, %43 : vector<8x8xf32>
    %cst_25 = arith.constant dense<0.000000e+00> : vector<8xf32>
    %45 = vector.multi_reduction <add>, %44, %cst_25 [1] : vector<8x8xf32> to vector<8xf32>
    %46 = vector.shape_cast %45 : vector<8xf32> to vector<8x1xf32>
    %47 = arith.addf %35, %46 : vector<8x1xf32>
    %48 = vector.extract_strided_slice %0 {offsets = [0, 1, 0], sizes = [8, 1, 32], strides = [1, 1, 1]} : vector<8x8x32xf32> to vector<8x1x32xf32>
    %49 = vector.extract_strided_slice %20 {offsets = [0, 1, 0], sizes = [8, 1, 32], strides = [1, 1, 1]} : vector<8x8x32xf32> to vector<8x1x32xf32>
    %50 = vector.broadcast %48 : vector<8x1x32xf32> to vector<8x8x32xf32>
    %51 = arith.mulf %20, %50 : vector<8x8x32xf32>
    %cst_26 = arith.constant dense<0.000000e+00> : vector<8x8xf32>
    %52 = vector.multi_reduction <add>, %51, %cst_26 [2] : vector<8x8x32xf32> to vector<8x8xf32>
    %53 = vector.broadcast %49 : vector<8x1x32xf32> to vector<8x8x32xf32>
    %54 = arith.mulf %24, %53 : vector<8x8x32xf32>
    %cst_27 = arith.constant dense<0.000000e+00> : vector<8x8xf32>
    %55 = vector.multi_reduction <add>, %54, %cst_27 [2] : vector<8x8x32xf32> to vector<8x8xf32>
    %56 = arith.mulf %52, %55 : vector<8x8xf32>
    %cst_28 = arith.constant dense<0.000000e+00> : vector<8xf32>
    %57 = vector.multi_reduction <add>, %56, %cst_28 [1] : vector<8x8xf32> to vector<8xf32>
    %58 = vector.shape_cast %57 : vector<8xf32> to vector<8x1xf32>
    %59 = arith.addf %47, %58 : vector<8x1xf32>
    %60 = vector.extract_strided_slice %0 {offsets = [0, 2, 0], sizes = [8, 1, 32], strides = [1, 1, 1]} : vector<8x8x32xf32> to vector<8x1x32xf32>
    %61 = vector.extract_strided_slice %20 {offsets = [0, 2, 0], sizes = [8, 1, 32], strides = [1, 1, 1]} : vector<8x8x32xf32> to vector<8x1x32xf32>
    %62 = vector.broadcast %60 : vector<8x1x32xf32> to vector<8x8x32xf32>
    %63 = arith.mulf %20, %62 : vector<8x8x32xf32>
    %cst_29 = arith.constant dense<0.000000e+00> : vector<8x8xf32>
    %64 = vector.multi_reduction <add>, %63, %cst_29 [2] : vector<8x8x32xf32> to vector<8x8xf32>
    %65 = vector.broadcast %61 : vector<8x1x32xf32> to vector<8x8x32xf32>
    %66 = arith.mulf %24, %65 : vector<8x8x32xf32>
    %cst_30 = arith.constant dense<0.000000e+00> : vector<8x8xf32>
    %67 = vector.multi_reduction <add>, %66, %cst_30 [2] : vector<8x8x32xf32> to vector<8x8xf32>
    %68 = arith.mulf %64, %67 : vector<8x8xf32>
    %cst_31 = arith.constant dense<0.000000e+00> : vector<8xf32>
    %69 = vector.multi_reduction <add>, %68, %cst_31 [1] : vector<8x8xf32> to vector<8xf32>
    %70 = vector.shape_cast %69 : vector<8xf32> to vector<8x1xf32>
    %71 = arith.addf %59, %70 : vector<8x1xf32>
    %72 = vector.extract_strided_slice %0 {offsets = [0, 3, 0], sizes = [8, 1, 32], strides = [1, 1, 1]} : vector<8x8x32xf32> to vector<8x1x32xf32>
    %73 = vector.extract_strided_slice %20 {offsets = [0, 3, 0], sizes = [8, 1, 32], strides = [1, 1, 1]} : vector<8x8x32xf32> to vector<8x1x32xf32>
    %74 = vector.broadcast %72 : vector<8x1x32xf32> to vector<8x8x32xf32>
    %75 = arith.mulf %20, %74 : vector<8x8x32xf32>
    %cst_32 = arith.constant dense<0.000000e+00> : vector<8x8xf32>
    %76 = vector.multi_reduction <add>, %75, %cst_32 [2] : vector<8x8x32xf32> to vector<8x8xf32>
    %77 = vector.broadcast %73 : vector<8x1x32xf32> to vector<8x8x32xf32>
    %78 = arith.mulf %24, %77 : vector<8x8x32xf32>
    %cst_33 = arith.constant dense<0.000000e+00> : vector<8x8xf32>
    %79 = vector.multi_reduction <add>, %78, %cst_33 [2] : vector<8x8x32xf32> to vector<8x8xf32>
    %80 = arith.mulf %76, %79 : vector<8x8xf32>
    %cst_34 = arith.constant dense<0.000000e+00> : vector<8xf32>
    %81 = vector.multi_reduction <add>, %80, %cst_34 [1] : vector<8x8xf32> to vector<8xf32>
    %82 = vector.shape_cast %81 : vector<8xf32> to vector<8x1xf32>
    %83 = arith.addf %71, %82 : vector<8x1xf32>
    %84 = vector.extract_strided_slice %0 {offsets = [0, 4, 0], sizes = [8, 1, 32], strides = [1, 1, 1]} : vector<8x8x32xf32> to vector<8x1x32xf32>
    %85 = vector.extract_strided_slice %20 {offsets = [0, 4, 0], sizes = [8, 1, 32], strides = [1, 1, 1]} : vector<8x8x32xf32> to vector<8x1x32xf32>
    %86 = vector.broadcast %84 : vector<8x1x32xf32> to vector<8x8x32xf32>
    %87 = arith.mulf %20, %86 : vector<8x8x32xf32>
    %cst_35 = arith.constant dense<0.000000e+00> : vector<8x8xf32>
    %88 = vector.multi_reduction <add>, %87, %cst_35 [2] : vector<8x8x32xf32> to vector<8x8xf32>
    %89 = vector.broadcast %85 : vector<8x1x32xf32> to vector<8x8x32xf32>
    %90 = arith.mulf %24, %89 : vector<8x8x32xf32>
    %cst_36 = arith.constant dense<0.000000e+00> : vector<8x8xf32>
    %91 = vector.multi_reduction <add>, %90, %cst_36 [2] : vector<8x8x32xf32> to vector<8x8xf32>
    %92 = arith.mulf %88, %91 : vector<8x8xf32>
    %cst_37 = arith.constant dense<0.000000e+00> : vector<8xf32>
    %93 = vector.multi_reduction <add>, %92, %cst_37 [1] : vector<8x8xf32> to vector<8xf32>
    %94 = vector.shape_cast %93 : vector<8xf32> to vector<8x1xf32>
    %95 = arith.addf %83, %94 : vector<8x1xf32>
    %96 = vector.extract_strided_slice %0 {offsets = [0, 5, 0], sizes = [8, 1, 32], strides = [1, 1, 1]} : vector<8x8x32xf32> to vector<8x1x32xf32>
    %97 = vector.extract_strided_slice %20 {offsets = [0, 5, 0], sizes = [8, 1, 32], strides = [1, 1, 1]} : vector<8x8x32xf32> to vector<8x1x32xf32>
    %98 = vector.broadcast %96 : vector<8x1x32xf32> to vector<8x8x32xf32>
    %99 = arith.mulf %20, %98 : vector<8x8x32xf32>
    %cst_38 = arith.constant dense<0.000000e+00> : vector<8x8xf32>
    %100 = vector.multi_reduction <add>, %99, %cst_38 [2] : vector<8x8x32xf32> to vector<8x8xf32>
    %101 = vector.broadcast %97 : vector<8x1x32xf32> to vector<8x8x32xf32>
    %102 = arith.mulf %24, %101 : vector<8x8x32xf32>
    %cst_39 = arith.constant dense<0.000000e+00> : vector<8x8xf32>
    %103 = vector.multi_reduction <add>, %102, %cst_39 [2] : vector<8x8x32xf32> to vector<8x8xf32>
    %104 = arith.mulf %100, %103 : vector<8x8xf32>
    %cst_40 = arith.constant dense<0.000000e+00> : vector<8xf32>
    %105 = vector.multi_reduction <add>, %104, %cst_40 [1] : vector<8x8xf32> to vector<8xf32>
    %106 = vector.shape_cast %105 : vector<8xf32> to vector<8x1xf32>
    %107 = arith.addf %95, %106 : vector<8x1xf32>
    %108 = vector.extract_strided_slice %0 {offsets = [0, 6, 0], sizes = [8, 1, 32], strides = [1, 1, 1]} : vector<8x8x32xf32> to vector<8x1x32xf32>
    %109 = vector.extract_strided_slice %20 {offsets = [0, 6, 0], sizes = [8, 1, 32], strides = [1, 1, 1]} : vector<8x8x32xf32> to vector<8x1x32xf32>
    %110 = vector.broadcast %108 : vector<8x1x32xf32> to vector<8x8x32xf32>
    %111 = arith.mulf %20, %110 : vector<8x8x32xf32>
    %cst_41 = arith.constant dense<0.000000e+00> : vector<8x8xf32>
    %112 = vector.multi_reduction <add>, %111, %cst_41 [2] : vector<8x8x32xf32> to vector<8x8xf32>
    %113 = vector.broadcast %109 : vector<8x1x32xf32> to vector<8x8x32xf32>
    %114 = arith.mulf %24, %113 : vector<8x8x32xf32>
    %cst_42 = arith.constant dense<0.000000e+00> : vector<8x8xf32>
    %115 = vector.multi_reduction <add>, %114, %cst_42 [2] : vector<8x8x32xf32> to vector<8x8xf32>
    %116 = arith.mulf %112, %115 : vector<8x8xf32>
    %cst_43 = arith.constant dense<0.000000e+00> : vector<8xf32>
    %117 = vector.multi_reduction <add>, %116, %cst_43 [1] : vector<8x8xf32> to vector<8xf32>
    %118 = vector.shape_cast %117 : vector<8xf32> to vector<8x1xf32>
    %119 = arith.addf %107, %118 : vector<8x1xf32>
    %120 = vector.extract_strided_slice %0 {offsets = [0, 7, 0], sizes = [8, 1, 32], strides = [1, 1, 1]} : vector<8x8x32xf32> to vector<8x1x32xf32>
    %121 = vector.extract_strided_slice %20 {offsets = [0, 7, 0], sizes = [8, 1, 32], strides = [1, 1, 1]} : vector<8x8x32xf32> to vector<8x1x32xf32>
    %122 = vector.broadcast %120 : vector<8x1x32xf32> to vector<8x8x32xf32>
    %123 = arith.mulf %20, %122 : vector<8x8x32xf32>
    %cst_44 = arith.constant dense<0.000000e+00> : vector<8x8xf32>
    %124 = vector.multi_reduction <add>, %123, %cst_44 [2] : vector<8x8x32xf32> to vector<8x8xf32>
    %125 = vector.broadcast %121 : vector<8x1x32xf32> to vector<8x8x32xf32>
    %126 = arith.mulf %24, %125 : vector<8x8x32xf32>
    %cst_45 = arith.constant dense<0.000000e+00> : vector<8x8xf32>
    %127 = vector.multi_reduction <add>, %126, %cst_45 [2] : vector<8x8x32xf32> to vector<8x8xf32>
    %128 = arith.mulf %124, %127 : vector<8x8xf32>
    %cst_46 = arith.constant dense<0.000000e+00> : vector<8xf32>
    %129 = vector.multi_reduction <add>, %128, %cst_46 [1] : vector<8x8xf32> to vector<8xf32>
    %130 = vector.shape_cast %129 : vector<8xf32> to vector<8x1xf32>
    %131 = arith.addf %119, %130 : vector<8x1xf32>
    %cst_47 = arith.constant 0.000000e+00 : f32
    %132 = vector.broadcast %cst_47 : f32 to vector<8x1xf32>
    %133 = arith.subf %132, %131 : vector<8x1xf32>
    %134 = arith.addf %34, %133 : vector<8x1xf32>
    %c0_48 = arith.constant 0 : index
    %c0_49 = arith.constant 0 : index
    %135 = vector.load %arg2[%c0_48, %c0_49] : memref<8x1xf32, #tpu.memory_space<vmem>>, vector<8x1xf32>
    %136 = arith.addf %134, %135 : vector<8x1xf32>
    %c0_50 = arith.constant 0 : index
    %c0_51 = arith.constant 0 : index
    %137 = vector.load %arg6[%c0_50, %c0_51] : memref<8x1xf32, #tpu.memory_space<vmem>>, vector<8x1xf32>
    tpu.vector_store %arg6[%c0_50, %c0_51], %136 {strides = array<i32>} : memref<8x1xf32, #tpu.memory_space<vmem>>, vector<8x1xf32>,
    return
  }
  func.func @transform_0(%arg0: i32) -> (i32, i32, i32) {
    %c0_i32 = arith.constant 0 : i32
    %c0_i32_0 = arith.constant 0 : i32
    %c0_i32_1 = arith.constant 0 : i32
    return %arg0, %c0_i32, %c0_i32_0 : i32, i32, i32
  }
  func.func @transform_1(%arg0: i32) -> (i32, i32) {
    %c0_i32 = arith.constant 0 : i32
    %c0_i32_0 = arith.constant 0 : i32
    return %arg0, %c0_i32 : i32, i32
  }
  func.func @transform_2(%arg0: i32) -> (i32, i32) {
    %c0_i32 = arith.constant 0 : i32
    %c0_i32_0 = arith.constant 0 : i32
    %c0_i32_1 = arith.constant 0 : i32
    return %c0_i32, %c0_i32_0 : i32, i32
  }
  func.func @transform_3(%arg0: i32) -> (i32, i32, i32) {
    %c0_i32 = arith.constant 0 : i32
    %c0_i32_0 = arith.constant 0 : i32
    %c0_i32_1 = arith.constant 0 : i32
    %c0_i32_2 = arith.constant 0 : i32
    return %c0_i32, %c0_i32_0, %c0_i32_1 : i32, i32, i32
  }
  func.func @transform_4(%arg0: i32) -> (i32, i32, i32) {
    %c0_i32 = arith.constant 0 : i32
    %c0_i32_0 = arith.constant 0 : i32
    %c0_i32_1 = arith.constant 0 : i32
    %c0_i32_2 = arith.constant 0 : i32
    return %c0_i32, %c0_i32_0, %c0_i32_1 : i32, i32, i32
  }
  func.func @transform_5(%arg0: i32) -> (i32, i32) {
    %c0_i32 = arith.constant 0 : i32
    %c0_i32_0 = arith.constant 0 : i32
    return %arg0, %c0_i32 : i32, i32
  }
}

</mosaic_0001>

<llo_original>
// kernel: gmlfm_forward.1
$region0: #{gmlfm_forward.1}
  #allocation0 [shape = 'u32[]', space=smem, size = 0x4, offset = 0x4, fixed_abs, tag = 'smem constant byte address 0x4 - core index']
  #allocation1 [shape = 'u32[72,128]{1,0:T(1,128)}', space=vmem, size = 0x9000, scoped, tag = 'internal scratch']
  %s0 = inlined_call_operand.vmem [shape: f32[24,8,32], index: 0, kind: input, shape index: {}]
  %s1 = inlined_call_operand.vmem [shape: f32[24,1], index: 1, kind: input, shape index: {}]
  %s2 = inlined_call_operand.vmem [shape: f32[1,32], index: 2, kind: input, shape index: {}]
  %s3 = inlined_call_operand.vmem [shape: f32[2,32,32], index: 3, kind: input, shape index: {}]
  %s4 = inlined_call_operand.vmem [shape: f32[2,1,32], index: 4, kind: input, shape index: {}]
  %s5 = inlined_call_operand.vmem [shape: f32[24,1], index: 5, kind: output, shape index: {}]
  %s6 = sld [smem:[#allocation0]]
  $region53: #{gmlfm_forward.1} parent=0
    _
  %s8 = ssub.s32 1, %s6
  %s9 = scalar_select 0, %s8, %s6
  loop: start=0, step=1, limit=5
  $region2: #{gmlfm_forward.1} parent=0 // loop_pre_header
    _
  $region3: #{gmlfm_forward.1} parent=0 // loop_header
    %s11 = sphi 0, %s15
    %p12 = scmp.ge.s32.totalorder %s11, 5
    %s21 = sphi 0, %s23
    %s24 = sphi 0, %s21
    %s25 = sphi 0, %s24
    %s41 = sphi 0, %s25
    %s47 = sphi 0, %s49
    %s50 = sphi 0, %s47
    %s51 = sphi 0, %s50
    %s67 = sphi 0, %s51
    %s71 = sphi 0, %s71
    %s73 = sphi 0, %s71
    %s74 = sphi 0, %s73
    %s88 = sphi 0, %s74
    %s92 = sphi 0, %s92
    %s94 = sphi 0, %s92
    %s95 = sphi 0, %s94
    %s109 = sphi 0, %s95
    %s113 = sphi 0, %s113
    %s115 = sphi 0, %s113
    %s116 = sphi 0, %s115
    %s130 = sphi 0, %s116
    %s136 = sphi 0, %s138
    %s139 = sphi 0, %s136
    %s140 = sphi 0, %s139
    %s156 = sphi 0, %s140
  $region4: #{gmlfm_forward.1} parent=0 // loop_header_branch
    %14 = sbr.rel (%p12) target = $region8
  $region5: #{gmlfm_forward.1} parent=0 // loop_body
    %s16 = ssub.s32 %s11, 1
    %s17 = ssub.s32 %s11, 2
    %s18 = sadd.s32 %s11, 1
    %s19 = ssub.s32 %s11, %s18
    %p20 = scmp.eq.s32.totalorder %s19, 0
    %s22 = sadd.s32 %s21, 1
    %s23 = scalar_select %p20, %s21, %s22
    %p26 = pneg %p20
    %p27 = scmp.eq.s32.totalorder %s11, 2
    %p28 = por %p26, %p27
    %p29 = scmp.ne.s32.totalorder %s21, %s24
    %p30 = scmp.eq.s32.totalorder %s11, 0
    %p31 = por %p29, %p30
    %p32 = scmp.ne.s32.totalorder %s21, %s24
    %p33 = scmp.eq.s32.totalorder %s16, 2
    %p34 = por %p32, %p33
    %p35 = scmp.ne.s32.totalorder %s24, %s25
    %p36 = scmp.eq.s32.totalorder %s16, 0
    %p37 = por %p35, %p36
    %p38 = scmp.ne.s32.totalorder %s24, %s25
    %p39 = scmp.eq.s32.totalorder %s17, 2
    %p40 = por %p38, %p39
    %p42 = scmp.ne.s32.totalorder %s25, %s41
    %p43 = scmp.eq.s32.totalorder %s17, 0
    %p44 = por %p42, %p43
    %s45 = ssub.s32 %s11, %s18
    %p46 = scmp.eq.s32.totalorder %s45, 0
    %s48 = sadd.s32 %s47, 1
    %s49 = scalar_select %p46, %s47, %s48
    %p52 = pneg %p46
    %p53 = scmp.eq.s32.totalorder %s11, 2
    %p54 = por %p52, %p53
    %p55 = scmp.ne.s32.totalorder %s47, %s50
    %p56 = scmp.eq.s32.totalorder %s11, 0
    %p57 = por %p55, %p56
    %p58 = scmp.ne.s32.totalorder %s47, %s50
    %p59 = scmp.eq.s32.totalorder %s16, 2
    %p60 = por %p58, %p59
    %p61 = scmp.ne.s32.totalorder %s50, %s51
    %p62 = scmp.eq.s32.totalorder %s16, 0
    %p63 = por %p61, %p62
    %p64 = scmp.ne.s32.totalorder %s50, %s51
    %p65 = scmp.eq.s32.totalorder %s17, 2
    %p66 = por %p64, %p65
    %p68 = scmp.ne.s32.totalorder %s51, %s67
    %p69 = scmp.eq.s32.totalorder %s17, 0
    %p70 = por %p68, %p69
    %s72 = sadd.s32 %s71, 1
    %p75 = scmp.eq.s32.totalorder %s11, 2
    %p76 = scmp.ne.s32.totalorder %s71, %s73
    %p77 = scmp.eq.s32.totalorder %s11, 0
    %p78 = por %p76, %p77
    %p79 = scmp.ne.s32.totalorder %s71, %s73
    %p80 = scmp.eq.s32.totalorder %s16, 2
    %p81 = por %p79, %p80
    %p82 = scmp.ne.s32.totalorder %s73, %s74
    %p83 = scmp.eq.s32.totalorder %s16, 0
    %p84 = por %p82, %p83
    %p85 = scmp.ne.s32.totalorder %s73, %s74
    %p86 = scmp.eq.s32.totalorder %s17, 2
    %p87 = por %p85, %p86
    %p89 = scmp.ne.s32.totalorder %s74, %s88
    %p90 = scmp.eq.s32.totalorder %s17, 0
    %p91 = por %p89, %p90
    %s93 = sadd.s32 %s92, 1
    %p96 = scmp.eq.s32.totalorder %s11, 2
    %p97 = scmp.ne.s32.totalorder %s92, %s94
    %p98 = scmp.eq.s32.totalorder %s11, 0
    %p99 = por %p97, %p98
    %p100 = scmp.ne.s32.totalorder %s92, %s94
    %p101 = scmp.eq.s32.totalorder %s16, 2
    %p102 = por %p100, %p101
    %p103 = scmp.ne.s32.totalorder %s94, %s95
    %p104 = scmp.eq.s32.totalorder %s16, 0
    %p105 = por %p103, %p104
    %p106 = scmp.ne.s32.totalorder %s94, %s95
    %p107 = scmp.eq.s32.totalorder %s17, 2
    %p108 = por %p106, %p107
    %p110 = scmp.ne.s32.totalorder %s95, %s109
    %p111 = scmp.eq.s32.totalorder %s17, 0
    %p112 = por %p110, %p111
    %s114 = sadd.s32 %s113, 1
    %p117 = scmp.eq.s32.totalorder %s11, 2
    %p118 = scmp.ne.s32.totalorder %s113, %s115
    %p119 = scmp.eq.s32.totalorder %s11, 0
    %p120 = por %p118, %p119
    %p121 = scmp.ne.s32.totalorder %s113, %s115
    %p122 = scmp.eq.s32.totalorder %s16, 2
    %p123 = por %p121, %p122
    %p124 = scmp.ne.s32.totalorder %s115, %s116
    %p125 = scmp.eq.s32.totalorder %s16, 0
    %p126 = por %p124, %p125
    %p127 = scmp.ne.s32.totalorder %s115, %s116
    %p128 = scmp.eq.s32.totalorder %s17, 2
    %p129 = por %p127, %p128
    %p131 = scmp.ne.s32.totalorder %s116, %s130
    %p132 = scmp.eq.s32.totalorder %s17, 0
    %p133 = por %p131, %p132
    %s134 = ssub.s32 %s11, %s18
    %p135 = scmp.eq.s32.totalorder %s134, 0
    %s137 = sadd.s32 %s136, 1
    %s138 = scalar_select %p135, %s136, %s137
    %p141 = pneg %p135
    %p142 = scmp.eq.s32.totalorder %s11, 2
    %p143 = por %p141, %p142
    %p144 = scmp.ne.s32.totalorder %s136, %s139
    %p145 = scmp.eq.s32.totalorder %s11, 0
    %p146 = por %p144, %p145
    %p147 = scmp.ne.s32.totalorder %s136, %s139
    %p148 = scmp.eq.s32.totalorder %s16, 2
    %p149 = por %p147, %p148
    %p150 = scmp.ne.s32.totalorder %s139, %s140
    %p151 = scmp.eq.s32.totalorder %s16, 0
    %p152 = por %p150, %p151
    %p153 = scmp.ne.s32.totalorder %s139, %s140
    %p154 = scmp.eq.s32.totalorder %s17, 2
    %p155 = por %p153, %p154
    %p157 = scmp.ne.s32.totalorder %s140, %s156
    %p158 = scmp.eq.s32.totalorder %s17, 0
    %p159 = por %p157, %p158
    %p160 = scmp.le.s32.totalorder 1, %s11
    %p161 = scmp.lt.s32.totalorder %s11, 4
    %p162 = pnand %p160, %p161
    %p163 = pneg %p162
    // Predicated region
    $region9: #{gmlfm_forward.1} parent=5 // pred_check
      _
    $region10: #{gmlfm_forward.1} parent=5 // pred_check_branch
      %165 = sbr.rel (%p162) target = $region12
    $region11: #{gmlfm_forward.1} parent=5 // pred_region
      %s166 = ssub.s32 %s11, 1
      // Predicated region
      $region13: #{gmlfm_forward.1} parent=11 // pred_check
        %p167 = pneg %p84
      $region14: #{gmlfm_forward.1} parent=11 // pred_check_branch
        %169 = sbr.rel (%p167) target = $region16
      $region15: #{gmlfm_forward.1} parent=11 // pred_region
        _
      $region16: #{gmlfm_forward.1} parent=11 // pred_fallthru
        _
      // Predicated region
      $region17: #{gmlfm_forward.1} parent=11 // pred_check
        %p170 = pneg %p105
      $region18: #{gmlfm_forward.1} parent=11 // pred_check_branch
        %172 = sbr.rel (%p170) target = $region20
      $region19: #{gmlfm_forward.1} parent=11 // pred_region
        _
      $region20: #{gmlfm_forward.1} parent=11 // pred_fallthru
        _
      // Predicated region
      $region21: #{gmlfm_forward.1} parent=11 // pred_check
        %p173 = pneg %p126
      $region22: #{gmlfm_forward.1} parent=11 // pred_check_branch
        %175 = sbr.rel (%p173) target = $region24
      $region23: #{gmlfm_forward.1} parent=11 // pred_region
        _
      $region24: #{gmlfm_forward.1} parent=11 // pred_fallthru
        _
    $region12: #{gmlfm_forward.1} parent=5 // pred_fallthru
      _
    %p176 = scmp.lt.s32.totalorder %s11, 3
    // Predicated region
    $region25: #{gmlfm_forward.1} parent=5 // pred_check
      %p177 = pneg %p176
    $region26: #{gmlfm_forward.1} parent=5 // pred_check_branch
      %179 = sbr.rel (%p177) target = $region28
    $region27: #{gmlfm_forward.1} parent=5 // pred_region
      // Predicated region
      $region29: #{gmlfm_forward.1} parent=27 // pred_check
        %p180 = pneg %p31
      $region30: #{gmlfm_forward.1} parent=27 // pred_check_branch
        %182 = sbr.rel (%p180) target = $region32
      $region31: #{gmlfm_forward.1} parent=27 // pred_region
        %s183 = smul.u32 8, %s11
        %p184 = scmp.lt.s32.totalorder %s183, 23
        %s185 = scalar_select %p184, %s183, 23
        %s186 = smul.addr %s185, 8
        %s187 = scalar_lea.vmem %s0, %s186
        %s188 = smul.u32 8, %s11
      $region32: #{gmlfm_forward.1} parent=27 // pred_fallthru
        _
      // Predicated region
      $region33: #{gmlfm_forward.1} parent=27 // pred_check
        %p189 = pneg %p57
      $region34: #{gmlfm_forward.1} parent=27 // pred_check_branch
        %191 = sbr.rel (%p189) target = $region36
      $region35: #{gmlfm_forward.1} parent=27 // pred_region
        %p192 = scmp.lt.s32.totalorder %s11, 2
        %s193 = scalar_select %p192, %s11, 2
        %s194 = smul.addr %s193, 8
        %s195 = scalar_lea.vmem %s1, %s194
      $region36: #{gmlfm_forward.1} parent=27 // pred_fallthru
        _
    $region28: #{gmlfm_forward.1} parent=5 // pred_fallthru
      _
    %p196 = scmp.le.s32.totalorder 1, %s11
    %p197 = scmp.lt.s32.totalorder %s11, 4
    %p198 = pnand %p196, %p197
    %p199 = pneg %p198
    // Predicated region
    $region37: #{gmlfm_forward.1} parent=5 // pred_check
      _
    $region38: #{gmlfm_forward.1} parent=5 // pred_check_branch
      %201 = sbr.rel (%p198) target = $region40
    $region39: #{gmlfm_forward.1} parent=5 // pred_region
      %s202 = ssub.s32 %s11, 1
      %s203 = smul.u32 8, %s16
      %p204 = scmp.lt.s32.totalorder %s203, 23
      %s205 = scalar_select %p204, %s203, 23
      %s206 = smul.addr %s205, 8
      %s207 = scalar_lea.vmem %s0, %s206
      %p208 = pneg %p37
      %p209 = pneg %p34
      %p210 = scmp.lt.s32.totalorder %s16, 2
      %s211 = scalar_select %p210, %s16, 2
      %s212 = smul.addr %s211, 8
      %s213 = scalar_lea.vmem %s1, %s212
      %p214 = pneg %p63
      %p215 = pneg %p60
      %p216 = pneg %p84
      %p217 = pneg %p81
      %p218 = pneg %p105
      %p219 = pneg %p102
      %p220 = pneg %p126
      %p221 = pneg %p123
      %p222 = pneg %p152
      %p223 = pneg %p149
      %p224 = scmp.lt.s32.totalorder %s16, 2
      %s225 = scalar_select %p224, %s16, 2
      %s226 = smul.addr %s225, 8
      %s227 = scalar_lea.vmem %s5, %s226
      %s228 = smul.u32 8, %s16
      %p229 = scmp.lt.s32.totalorder %s228, 23
      %s230 = scalar_select %p229, %s228, 23
      %s231 = smul.addr %s230, 8
      %s232 = scalar_lea.vmem %s0, %s231
      %s233 = smul.u32 8, %s16
      %p234 = scmp.lt.s32.totalorder %s16, 2
      %s235 = scalar_select %p234, %s16, 2
      %s236 = smul.addr %s235, 8
      %s237 = scalar_lea.vmem %s1, %s236
      %p238 = scmp.lt.s32.totalorder %s16, 2
      %s239 = scalar_select %p238, %s16, 2
      %s240 = smul.addr %s239, 8
      %s241 = scalar_lea.vmem %s5, %s240
      %v242 = vld [vmem:[%s232] sm:$0xff]
      %v243 = vld [vmem:[%s232 + $0x8] sm:$0xff]
      %v244 = vld [vmem:[%s232 + $0x10] sm:$0xff]
      %v245 = vld [vmem:[%s232 + $0x18] sm:$0xff]
      %v246 = vld [vmem:[%s232 + $0x20] sm:$0xff]
      %v247 = vld [vmem:[%s232 + $0x28] sm:$0xff]
      %v248 = vld [vmem:[%s232 + $0x30] sm:$0xff]
      %v249 = vld [vmem:[%s232 + $0x38] sm:$0xff]
      %v250 = vld [vmem:[%s3] sm:$0xff]
      %v251 = vld [vmem:[%s3 + $0x8] sm:$0xff]
      %v252 = vld [vmem:[%s3 + $0x10] sm:$0xff]
      %v253 = vld [vmem:[%s3 + $0x18] sm:$0xff]
      %v254 = vld [vmem:[%s4] sm:$0x1]
      %v256 = vperm.slane %v254, 0
      %vm258 = vcmask 261120
      %v260 = vsel %vm258, %v242, 0
      %v263 = vsel %vm258, %v243, 0
      %v266 = vsel %vm258, %v244, 0
      %v269 = vsel %vm258, %v245, 0
      %v272 = vsel %vm258, %v246, 0
      %v275 = vsel %vm258, %v247, 0
      %v278 = vsel %vm258, %v248, 0
      %v281 = vsel %vm258, %v249, 0
      %283 = vmatpush.msra.mxu0 0.0
      %284 = vmatpush.msra.mxu0 0.0
      %285 = vmatpush.msra.mxu0 0.0
      %286 = vmatpush.msra.mxu0 0.0
      %287 = vmatpush.msra.mxu0 0.0
      %288 = vmatpush.msra.mxu0 0.0
      %289 = vmatpush.msra.mxu0 0.0
      %290 = vmatpush.msra.mxu0 0.0
      %291 = vmatpush.msra.mxu0 0.0
      %292 = vmatpush.msra.mxu0 0.0
      %293 = vmatpush.msra.mxu0 0.0
      %294 = vmatpush.msra.mxu0 0.0
      %295 = vmatpush.msra.mxu0 %v253
      %296 = vmatpush.msra.mxu0 %v252
      %297 = vmatpush.msra.mxu0 %v251
      %298 = vmatpush.msra.mxu0 %v250
      %299 = vmatmul.f32.gmra.mxu0 %v260
      %v300 = vpop.f32.mrf.mxu0
      %v301 = vadd.f32 %v256, %v300
      %302 = vmatmul.f32.gmra.mxu0 %v263
      %v303 = vpop.f32.mrf.mxu0
      %v304 = vadd.f32 %v256, %v303
      %305 = vmatmul.f32.gmra.mxu0 %v266
      %v306 = vpop.f32.mrf.mxu0
      %v307 = vadd.f32 %v256, %v306
      %308 = vmatmul.f32.gmra.mxu0 %v269
      %v309 = vpop.f32.mrf.mxu0
      %v310 = vadd.f32 %v256, %v309
      %311 = vmatmul.f32.gmra.mxu0 %v272
      %v312 = vpop.f32.mrf.mxu0
      %v313 = vadd.f32 %v256, %v312
      %314 = vmatmul.f32.gmra.mxu0 %v275
      %v315 = vpop.f32.mrf.mxu0
      %v316 = vadd.f32 %v256, %v315
      %317 = vmatmul.f32.gmra.mxu0 %v278
      %v318 = vpop.f32.mrf.mxu0
      %v319 = vadd.f32 %v256, %v318
      %320 = vmatmul.f32.gmra.mxu0 %v281
      %v321 = vpop.f32.mrf.mxu0
      %v322 = vadd.f32 %v256, %v321
      %323 = vdwg.mxu0
      %v324 = vmax.f32 %v301, 0.0
      %v325 = vmax.f32 %v304, 0.0
      %v326 = vmax.f32 %v307, 0.0
      %v327 = vmax.f32 %v310, 0.0
      %v328 = vmax.f32 %v313, 0.0
      %v329 = vmax.f32 %v316, 0.0
      %v330 = vmax.f32 %v319, 0.0
      %v331 = vmax.f32 %v322, 0.0
      %s332 = scalar_lea.vmem %s3, 32
      %v333 = vld [vmem:[%s332] sm:$0xff]
      %v334 = vld [vmem:[%s332 + $0x8] sm:$0xff]
      %v335 = vld [vmem:[%s332 + $0x10] sm:$0xff]
      %v336 = vld [vmem:[%s332 + $0x18] sm:$0xff]
      %s337 = scalar_lea.vmem %s4, 1
      %v338 = vld [vmem:[%s337] sm:$0x1]
      %v340 = vperm.slane %v338, 0
      %v343 = vsel %vm258, %v324, 0
      %v346 = vsel %vm258, %v325, 0
      %v349 = vsel %vm258, %v326, 0
      %v352 = vsel %vm258, %v327, 0
      %v355 = vsel %vm258, %v328, 0
      %v358 = vsel %vm258, %v329, 0
      %v361 = vsel %vm258, %v330, 0
      %v364 = vsel %vm258, %v331, 0
      %366 = vmatpush.msra.mxu0 0.0
      %367 = vmatpush.msra.mxu0 0.0
      %368 = vmatpush.msra.mxu0 0.0
      %369 = vmatpush.msra.mxu0 0.0
      %370 = vmatpush.msra.mxu0 0.0
      %371 = vmatpush.msra.mxu0 0.0
      %372 = vmatpush.msra.mxu0 0.0
      %373 = vmatpush.msra.mxu0 0.0
      %374 = vmatpush.msra.mxu0 0.0
      %375 = vmatpush.msra.mxu0 0.0
      %376 = vmatpush.msra.mxu0 0.0
      %377 = vmatpush.msra.mxu0 0.0
      %378 = vmatpush.msra.mxu0 %v336
      %379 = vmatpush.msra.mxu0 %v335
      %380 = vmatpush.msra.mxu0 %v334
      %381 = vmatpush.msra.mxu0 %v333
      %382 = vmatmul.f32.gmra.mxu0 %v343
      %v383 = vpop.f32.mrf.mxu0
      %v384 = vadd.f32 %v340, %v383
      %385 = vmatmul.f32.gmra.mxu0 %v346
      %v386 = vpop.f32.mrf.mxu0
      %v387 = vadd.f32 %v340, %v386
      %388 = vmatmul.f32.gmra.mxu0 %v349
      %v389 = vpop.f32.mrf.mxu0
      %v390 = vadd.f32 %v340, %v389
      %391 = vmatmul.f32.gmra.mxu0 %v352
      %v392 = vpop.f32.mrf.mxu0
      %v393 = vadd.f32 %v340, %v392
      %394 = vmatmul.f32.gmra.mxu0 %v355
      %v395 = vpop.f32.mrf.mxu0
      %v396 = vadd.f32 %v340, %v395
      %397 = vmatmul.f32.gmra.mxu0 %v358
      %v398 = vpop.f32.mrf.mxu0
      %v399 = vadd.f32 %v340, %v398
      %400 = vmatmul.f32.gmra.mxu0 %v361
      %v401 = vpop.f32.mrf.mxu0
      %v402 = vadd.f32 %v340, %v401
      %403 = vmatmul.f32.gmra.mxu0 %v364
      %v404 = vpop.f32.mrf.mxu0
      %v405 = vadd.f32 %v340, %v404
      %406 = vdwg.mxu0
      %v407 = vmax.f32 %v384, 0.0
      %v408 = vmax.f32 %v387, 0.0
      %v409 = vmax.f32 %v390, 0.0
      %v410 = vmax.f32 %v393, 0.0
      %v411 = vmax.f32 %v396, 0.0
      %v412 = vmax.f32 %v399, 0.0
      %v413 = vmax.f32 %v402, 0.0
      %v414 = vmax.f32 %v405, 0.0
      %v415 = vld [vmem:[%s2] sm:$0x1]
      %v417 = vperm.slane %v415, 0
      %v419 = vmul.f32 %v417, %v242
      %v420 = vmul.f32 %v417, %v243
      %v421 = vmul.f32 %v417, %v244
      %v422 = vmul.f32 %v417, %v245
      %v423 = vmul.f32 %v417, %v246
      %v424 = vmul.f32 %v417, %v247
      %v425 = vmul.f32 %v417, %v248
      %v426 = vmul.f32 %v417, %v249
      %v427 = vmul.f32 %v407, %v407
      %v428 = vmul.f32 %v408, %v408
      %v429 = vmul.f32 %v409, %v409
      %v430 = vmul.f32 %v410, %v410
      %v431 = vmul.f32 %v411, %v411
      %v432 = vmul.f32 %v412, %v412
      %v433 = vmul.f32 %v413, %v413
      %v434 = vmul.f32 %v414, %v414
      %v435 = vsel %vm258, %v427, 0.0
      %436 = vadd.xlane.f32.xlu0 %v435
      %v437 = vpop.xlane.xlu0 %436
      %v438 = vsel %vm258, %v428, 0.0
      %439 = vadd.xlane.f32.xlu0 %v438
      %v440 = vpop.xlane.xlu0 %439
      %v441 = vsel %vm258, %v429, 0.0
      %442 = vadd.xlane.f32.xlu0 %v441
      %v443 = vpop.xlane.xlu0 %442
      %v444 = vsel %vm258, %v430, 0.0
      %445 = vadd.xlane.f32.xlu0 %v444
      %v446 = vpop.xlane.xlu0 %445
      %v447 = vsel %vm258, %v431, 0.0
      %448 = vadd.xlane.f32.xlu0 %v447
      %v449 = vpop.xlane.xlu0 %448
      %v450 = vsel %vm258, %v432, 0.0
      %451 = vadd.xlane.f32.xlu0 %v450
      %v452 = vpop.xlane.xlu0 %451
      %v453 = vsel %vm258, %v433, 0.0
      %454 = vadd.xlane.f32.xlu0 %v453
      %v455 = vpop.xlane.xlu0 %454
      %v456 = vsel %vm258, %v434, 0.0
      %457 = vadd.xlane.f32.xlu0 %v456
      %v458 = vpop.xlane.xlu0 %457
      %v459 = vsel %vm258, %v242, 0.0
      %v460 = vrot.slane %v459, 4
      %v461 = vadd.f32 %v459, %v460
      %v462 = vrot.slane %v461, 2
      %v463 = vadd.f32 %v461, %v462
      %v464 = vrot.slane %v463, 1
      %v465 = vadd.f32 %v463, %v464
      %v466 = vsel %vm258, %v243, 0.0
      %v467 = vrot.slane %v466, 4
      %v468 = vadd.f32 %v466, %v467
      %v469 = vrot.slane %v468, 2
      %v470 = vadd.f32 %v468, %v469
      %v471 = vrot.slane %v470, 1
      %v472 = vadd.f32 %v470, %v471
      %v473 = vsel %vm258, %v244, 0.0
      %v474 = vrot.slane %v473, 4
      %v475 = vadd.f32 %v473, %v474
      %v476 = vrot.slane %v475, 2
      %v477 = vadd.f32 %v475, %v476
      %v478 = vrot.slane %v477, 1
      %v479 = vadd.f32 %v477, %v478
      %v480 = vsel %vm258, %v245, 0.0
      %v481 = vrot.slane %v480, 4
      %v482 = vadd.f32 %v480, %v481
      %v483 = vrot.slane %v482, 2
      %v484 = vadd.f32 %v482, %v483
      %v485 = vrot.slane %v484, 1
      %v486 = vadd.f32 %v484, %v485
      %v487 = vsel %vm258, %v246, 0.0
      %v488 = vrot.slane %v487, 4
      %v489 = vadd.f32 %v487, %v488
      %v490 = vrot.slane %v489, 2
      %v491 = vadd.f32 %v489, %v490
      %v492 = vrot.slane %v491, 1
      %v493 = vadd.f32 %v491, %v492
      %v494 = vsel %vm258, %v247, 0.0
      %v495 = vrot.slane %v494, 4
      %v496 = vadd.f32 %v494, %v495
      %v497 = vrot.slane %v496, 2
      %v498 = vadd.f32 %v496, %v497
      %v499 = vrot.slane %v498, 1
      %v500 = vadd.f32 %v498, %v499
      %v501 = vsel %vm258, %v248, 0.0
      %v502 = vrot.slane %v501, 4
      %v503 = vadd.f32 %v501, %v502
      %v504 = vrot.slane %v503, 2
      %v505 = vadd.f32 %v503, %v504
      %v506 = vrot.slane %v505, 1
      %v507 = vadd.f32 %v505, %v506
      %v508 = vsel %vm258, %v249, 0.0
      %v509 = vrot.slane %v508, 4
      %v510 = vadd.f32 %v508, %v509
      %v511 = vrot.slane %v510, 2
      %v512 = vadd.f32 %v510, %v511
      %v513 = vrot.slane %v512, 1
      %v514 = vadd.f32 %v512, %v513
      %v515 = vmul.f32 %v419, %v437
      %v516 = vmul.f32 %v420, %v440
      %v517 = vmul.f32 %v421, %v443
      %v518 = vmul.f32 %v422, %v446
      %v519 = vmul.f32 %v423, %v449
      %v520 = vmul.f32 %v424, %v452
      %v521 = vmul.f32 %v425, %v455
      %v522 = vmul.f32 %v426, %v458
      %v523 = vsel %vm258, %v515, 0.0
      %v524 = vrot.slane %v523, 4
      %v525 = vadd.f32 %v523, %v524
      %v526 = vrot.slane %v525, 2
      %v527 = vadd.f32 %v525, %v526
      %v528 = vrot.slane %v527, 1
      %v529 = vadd.f32 %v527, %v528
      %v530 = vsel %vm258, %v516, 0.0
      %v531 = vrot.slane %v530, 4
      %v532 = vadd.f32 %v530, %v531
      %v533 = vrot.slane %v532, 2
      %v534 = vadd.f32 %v532, %v533
      %v535 = vrot.slane %v534, 1
      %v536 = vadd.f32 %v534, %v535
      %v537 = vsel %vm258, %v517, 0.0
      %v538 = vrot.slane %v537, 4
      %v539 = vadd.f32 %v537, %v538
      %v540 = vrot.slane %v539, 2
      %v541 = vadd.f32 %v539, %v540
      %v542 = vrot.slane %v541, 1
      %v543 = vadd.f32 %v541, %v542
      %v544 = vsel %vm258, %v518, 0.0
      %v545 = vrot.slane %v544, 4
      %v546 = vadd.f32 %v544, %v545
      %v547 = vrot.slane %v546, 2
      %v548 = vadd.f32 %v546, %v547
      %v549 = vrot.slane %v548, 1
      %v550 = vadd.f32 %v548, %v549
      %v551 = vsel %vm258, %v519, 0.0
      %v552 = vrot.slane %v551, 4
      %v553 = vadd.f32 %v551, %v552
      %v554 = vrot.slane %v553, 2
      %v555 = vadd.f32 %v553, %v554
      %v556 = vrot.slane %v555, 1
      %v557 = vadd.f32 %v555, %v556
      %v558 = vsel %vm258, %v520, 0.0
      %v559 = vrot.slane %v558, 4
      %v560 = vadd.f32 %v558, %v559
      %v561 = vrot.slane %v560, 2
      %v562 = vadd.f32 %v560, %v561
      %v563 = vrot.slane %v562, 1
      %v564 = vadd.f32 %v562, %v563
      %v565 = vsel %vm258, %v521, 0.0
      %v566 = vrot.slane %v565, 4
      %v567 = vadd.f32 %v565, %v566
      %v568 = vrot.slane %v567, 2
      %v569 = vadd.f32 %v567, %v568
      %v570 = vrot.slane %v569, 1
      %v571 = vadd.f32 %v569, %v570
      %v572 = vsel %vm258, %v522, 0.0
      %v573 = vrot.slane %v572, 4
      %v574 = vadd.f32 %v572, %v573
      %v575 = vrot.slane %v574, 2
      %v576 = vadd.f32 %v574, %v575
      %v577 = vrot.slane %v576, 1
      %v578 = vadd.f32 %v576, %v577
      %v579 = vmul.f32 %v465, %v529
      %v580 = vmul.f32 %v472, %v536
      %v581 = vmul.f32 %v479, %v543
      %v582 = vmul.f32 %v486, %v550
      %v583 = vmul.f32 %v493, %v557
      %v584 = vmul.f32 %v500, %v564
      %v585 = vmul.f32 %v507, %v571
      %v586 = vmul.f32 %v514, %v578
      %vm595 = vcmask 1041409
      %v596 = vsel %vm595, %v580, %v579
      %vm597 = vcmask 1042434
      %v598 = vsel %vm597, %v581, %v596
      %vm599 = vcmask 1043459
      %v600 = vsel %vm599, %v582, %v598
      %vm601 = vcmask 1044484
      %v602 = vsel %vm601, %v583, %v600
      %vm603 = vcmask 1045509
      %v604 = vsel %vm603, %v584, %v602
      %vm605 = vcmask 1046534
      %v606 = vsel %vm605, %v585, %v604
      %vm607 = vcmask 1047559
      %v608 = vsel %vm607, %v586, %v606
      %v610 = vsel %vm258, %v608, 0.0
      %611 = vadd.xlane.f32.xlu0 %v610
      %v612 = vpop.xlane.xlu0 %611
      %v613 = vperm.slane %v242, 0
      %v614 = vperm.slane %v243, 0
      %v615 = vperm.slane %v244, 0
      %v616 = vperm.slane %v245, 0
      %v617 = vperm.slane %v246, 0
      %v618 = vperm.slane %v247, 0
      %v619 = vperm.slane %v248, 0
      %v620 = vperm.slane %v249, 0
      %v621 = vmul.f32 %v407, %v613
      %v622 = vmul.f32 %v408, %v614
      %v623 = vmul.f32 %v409, %v615
      %v624 = vmul.f32 %v410, %v616
      %v625 = vmul.f32 %v411, %v617
      %v626 = vmul.f32 %v412, %v618
      %v627 = vmul.f32 %v413, %v619
      %v628 = vmul.f32 %v414, %v620
      %v629 = vsel %vm258, %v621, 0.0
      %630 = vadd.xlane.f32.xlu0 %v629
      %v631 = vpop.xlane.xlu0 %630
      %v632 = vsel %vm258, %v622, 0.0
      %633 = vadd.xlane.f32.xlu0 %v632
      %v634 = vpop.xlane.xlu0 %633
      %v635 = vsel %vm258, %v623, 0.0
      %636 = vadd.xlane.f32.xlu0 %v635
      %v637 = vpop.xlane.xlu0 %636
      %v638 = vsel %vm258, %v624, 0.0
      %639 = vadd.xlane.f32.xlu0 %v638
      %v640 = vpop.xlane.xlu0 %639
      %v641 = vsel %vm258, %v625, 0.0
      %642 = vadd.xlane.f32.xlu0 %v641
      %v643 = vpop.xlane.xlu0 %642
      %v644 = vsel %vm258, %v626, 0.0
      %645 = vadd.xlane.f32.xlu0 %v644
      %v646 = vpop.xlane.xlu0 %645
      %v647 = vsel %vm258, %v627, 0.0
      %648 = vadd.xlane.f32.xlu0 %v647
      %v649 = vpop.xlane.xlu0 %648
      %v650 = vsel %vm258, %v628, 0.0
      %651 = vadd.xlane.f32.xlu0 %v650
      %v652 = vpop.xlane.xlu0 %651
      %v653 = vperm.slane %v407, 0
      %v654 = vperm.slane %v408, 0
      %v655 = vperm.slane %v409, 0
      %v656 = vperm.slane %v410, 0
      %v657 = vperm.slane %v411, 0
      %v658 = vperm.slane %v412, 0
      %v659 = vperm.slane %v413, 0
      %v660 = vperm.slane %v414, 0
      %v661 = vmul.f32 %v419, %v653
      %v662 = vmul.f32 %v420, %v654
      %v663 = vmul.f32 %v421, %v655
      %v664 = vmul.f32 %v422, %v656
      %v665 = vmul.f32 %v423, %v657
      %v666 = vmul.f32 %v424, %v658
      %v667 = vmul.f32 %v425, %v659
      %v668 = vmul.f32 %v426, %v660
      %v669 = vsel %vm258, %v661, 0.0
      %670 = vadd.xlane.f32.xlu0 %v669
      %v671 = vpop.xlane.xlu0 %670
      %v672 = vsel %vm258, %v662, 0.0
      %673 = vadd.xlane.f32.xlu0 %v672
      %v674 = vpop.xlane.xlu0 %673
      %v675 = vsel %vm258, %v663, 0.0
      %676 = vadd.xlane.f32.xlu0 %v675
      %v677 = vpop.xlane.xlu0 %676
      %v678 = vsel %vm258, %v664, 0.0
      %679 = vadd.xlane.f32.xlu0 %v678
      %v680 = vpop.xlane.xlu0 %679
      %v681 = vsel %vm258, %v665, 0.0
      %682 = vadd.xlane.f32.xlu0 %v681
      %v683 = vpop.xlane.xlu0 %682
      %v684 = vsel %vm258, %v666, 0.0
      %685 = vadd.xlane.f32.xlu0 %v684
      %v686 = vpop.xlane.xlu0 %685
      %v687 = vsel %vm258, %v667, 0.0
      %688 = vadd.xlane.f32.xlu0 %v687
      %v689 = vpop.xlane.xlu0 %688
      %v690 = vsel %vm258, %v668, 0.0
      %691 = vadd.xlane.f32.xlu0 %v690
      %v692 = vpop.xlane.xlu0 %691
      %v693 = vmul.f32 %v631, %v671
      %v694 = vmul.f32 %v634, %v674
      %v695 = vmul.f32 %v637, %v677
      %v696 = vmul.f32 %v640, %v680
      %v697 = vmul.f32 %v643, %v683
      %v698 = vmul.f32 %v646, %v686
      %v699 = vmul.f32 %v649, %v689
      %v700 = vmul.f32 %v652, %v692
      %v709 = vlaneseq
      %v710 = vand.u32 %v709, 127
      %v711 = vperm.slane %v693, %v710
      %v712 = vperm.slane %v694, %v710
      %v713 = vperm.slane %v695, %v710
      %v714 = vperm.slane %v696, %v710
      %v715 = vperm.slane %v697, %v710
      %v716 = vperm.slane %v698, %v710
      %v717 = vperm.slane %v699, %v710
      %v718 = vperm.slane %v700, %v710
      %v719 = vsel %vm595, %v712, %v711
      %v720 = vsel %vm597, %v713, %v719
      %v721 = vsel %vm599, %v714, %v720
      %v722 = vsel %vm601, %v715, %v721
      %v723 = vsel %vm603, %v716, %v722
      %v724 = vsel %vm605, %v717, %v723
      %v725 = vsel %vm607, %v718, %v724
      %vm727 = vcmask 64512
      %v728 = vsel %vm727, %v725, 0.0
      %729 = vadd.xlane.f32.xlu0 %v728
      %v730 = vpop.xlane.xlu0 %729
      %v731 = vadd.f32 %v730, 0.0
      %v732 = vperm.slane %v242, 1
      %v733 = vperm.slane %v243, 1
      %v734 = vperm.slane %v244, 1
      %v735 = vperm.slane %v245, 1
      %v736 = vperm.slane %v246, 1
      %v737 = vperm.slane %v247, 1
      %v738 = vperm.slane %v248, 1
      %v739 = vperm.slane %v249, 1
      %v740 = vmul.f32 %v407, %v732
      %v741 = vmul.f32 %v408, %v733
      %v742 = vmul.f32 %v409, %v734
      %v743 = vmul.f32 %v410, %v735
      %v744 = vmul.f32 %v411, %v736
      %v745 = vmul.f32 %v412, %v737
      %v746 = vmul.f32 %v413, %v738
      %v747 = vmul.f32 %v414, %v739
      %v748 = vsel %vm258, %v740, 0.0
      %749 = vadd.xlane.f32.xlu0 %v748
      %v750 = vpop.xlane.xlu0 %749
      %v751 = vsel %vm258, %v741, 0.0
      %752 = vadd.xlane.f32.xlu0 %v751
      %v753 = vpop.xlane.xlu0 %752
      %v754 = vsel %vm258, %v742, 0.0
      %755 = vadd.xlane.f32.xlu0 %v754
      %v756 = vpop.xlane.xlu0 %755
      %v757 = vsel %vm258, %v743, 0.0
      %758 = vadd.xlane.f32.xlu0 %v757
      %v759 = vpop.xlane.xlu0 %758
      %v760 = vsel %vm258, %v744, 0.0
      %761 = vadd.xlane.f32.xlu0 %v760
      %v762 = vpop.xlane.xlu0 %761
      %v763 = vsel %vm258, %v745, 0.0
      %764 = vadd.xlane.f32.xlu0 %v763
      %v765 = vpop.xlane.xlu0 %764
      %v766 = vsel %vm258, %v746, 0.0
      %767 = vadd.xlane.f32.xlu0 %v766
      %v768 = vpop.xlane.xlu0 %767
      %v769 = vsel %vm258, %v747, 0.0
      %770 = vadd.xlane.f32.xlu0 %v769
      %v771 = vpop.xlane.xlu0 %770
      %v772 = vperm.slane %v407, 1
      %v773 = vperm.slane %v408, 1
      %v774 = vperm.slane %v409, 1
      %v775 = vperm.slane %v410, 1
      %v776 = vperm.slane %v411, 1
      %v777 = vperm.slane %v412, 1
      %v778 = vperm.slane %v413, 1
      %v779 = vperm.slane %v414, 1
      %v780 = vmul.f32 %v419, %v772
      %v781 = vmul.f32 %v420, %v773
      %v782 = vmul.f32 %v421, %v774
      %v783 = vmul.f32 %v422, %v775
      %v784 = vmul.f32 %v423, %v776
      %v785 = vmul.f32 %v424, %v777
      %v786 = vmul.f32 %v425, %v778
      %v787 = vmul.f32 %v426, %v779
      %v788 = vsel %vm258, %v780, 0.0
      %789 = vadd.xlane.f32.xlu0 %v788
      %v790 = vpop.xlane.xlu0 %789
      %v791 = vsel %vm258, %v781, 0.0
      %792 = vadd.xlane.f32.xlu0 %v791
      %v793 = vpop.xlane.xlu0 %792
      %v794 = vsel %vm258, %v782, 0.0
      %795 = vadd.xlane.f32.xlu0 %v794
      %v796 = vpop.xlane.xlu0 %795
      %v797 = vsel %vm258, %v783, 0.0
      %798 = vadd.xlane.f32.xlu0 %v797
      %v799 = vpop.xlane.xlu0 %798
      %v800 = vsel %vm258, %v784, 0.0
      %801 = vadd.xlane.f32.xlu0 %v800
      %v802 = vpop.xlane.xlu0 %801
      %v803 = vsel %vm258, %v785, 0.0
      %804 = vadd.xlane.f32.xlu0 %v803
      %v805 = vpop.xlane.xlu0 %804
      %v806 = vsel %vm258, %v786, 0.0
      %807 = vadd.xlane.f32.xlu0 %v806
      %v808 = vpop.xlane.xlu0 %807
      %v809 = vsel %vm258, %v787, 0.0
      %810 = vadd.xlane.f32.xlu0 %v809
      %v811 = vpop.xlane.xlu0 %810
      %v812 = vmul.f32 %v750, %v790
      %v813 = vmul.f32 %v753, %v793
      %v814 = vmul.f32 %v756, %v796
      %v815 = vmul.f32 %v759, %v799
      %v816 = vmul.f32 %v762, %v802
      %v817 = vmul.f32 %v765, %v805
      %v818 = vmul.f32 %v768, %v808
      %v819 = vmul.f32 %v771, %v811
      %v828 = vperm.slane %v812, %v710
      %v829 = vperm.slane %v813, %v710
      %v830 = vperm.slane %v814, %v710
      %v831 = vperm.slane %v815, %v710
      %v832 = vperm.slane %v816, %v710
      %v833 = vperm.slane %v817, %v710
      %v834 = vperm.slane %v818, %v710
      %v835 = vperm.slane %v819, %v710
      %v836 = vsel %vm595, %v829, %v828
      %v837 = vsel %vm597, %v830, %v836
      %v838 = vsel %vm599, %v831, %v837
      %v839 = vsel %vm601, %v832, %v838
      %v840 = vsel %vm603, %v833, %v839
      %v841 = vsel %vm605, %v834, %v840
      %v842 = vsel %vm607, %v835, %v841
      %v844 = vsel %vm727, %v842, 0.0
      %845 = vadd.xlane.f32.xlu0 %v844
      %v846 = vpop.xlane.xlu0 %845
      %v847 = vadd.f32 %v731, %v846
      %v848 = vperm.slane %v242, 2
      %v849 = vperm.slane %v243, 2
      %v850 = vperm.slane %v244, 2
      %v851 = vperm.slane %v245, 2
      %v852 = vperm.slane %v246, 2
      %v853 = vperm.slane %v247, 2
      %v854 = vperm.slane %v248, 2
      %v855 = vperm.slane %v249, 2
      %v856 = vmul.f32 %v407, %v848
      %v857 = vmul.f32 %v408, %v849
      %v858 = vmul.f32 %v409, %v850
      %v859 = vmul.f32 %v410, %v851
      %v860 = vmul.f32 %v411, %v852
      %v861 = vmul.f32 %v412, %v853
      %v862 = vmul.f32 %v413, %v854
      %v863 = vmul.f32 %v414, %v855
      %v864 = vsel %vm258, %v856, 0.0
      %865 = vadd.xlane.f32.xlu0 %v864
      %v866 = vpop.xlane.xlu0 %865
      %v867 = vsel %vm258, %v857, 0.0
      %868 = vadd.xlane.f32.xlu0 %v867
      %v869 = vpop.xlane.xlu0 %868
      %v870 = vsel %vm258, %v858, 0.0
      %871 = vadd.xlane.f32.xlu0 %v870
      %v872 = vpop.xlane.xlu0 %871
      %v873 = vsel %vm258, %v859, 0.0
      %874 = vadd.xlane.f32.xlu0 %v873
      %v875 = vpop.xlane.xlu0 %874
      %v876 = vsel %vm258, %v860, 0.0
      %877 = vadd.xlane.f32.xlu0 %v876
      %v878 = vpop.xlane.xlu0 %877
      %v879 = vsel %vm258, %v861, 0.0
      %880 = vadd.xlane.f32.xlu0 %v879
      %v881 = vpop.xlane.xlu0 %880
      %v882 = vsel %vm258, %v862, 0.0
      %883 = vadd.xlane.f32.xlu0 %v882
      %v884 = vpop.xlane.xlu0 %883
      %v885 = vsel %vm258, %v863, 0.0
      %886 = vadd.xlane.f32.xlu0 %v885
      %v887 = vpop.xlane.xlu0 %886
      %v888 = vperm.slane %v407, 2
      %v889 = vperm.slane %v408, 2
      %v890 = vperm.slane %v409, 2
      %v891 = vperm.slane %v410, 2
      %v892 = vperm.slane %v411, 2
      %v893 = vperm.slane %v412, 2
      %v894 = vperm.slane %v413, 2
      %v895 = vperm.slane %v414, 2
      %v896 = vmul.f32 %v419, %v888
      %v897 = vmul.f32 %v420, %v889
      %v898 = vmul.f32 %v421, %v890
      %v899 = vmul.f32 %v422, %v891
      %v900 = vmul.f32 %v423, %v892
      %v901 = vmul.f32 %v424, %v893
      %v902 = vmul.f32 %v425, %v894
      %v903 = vmul.f32 %v426, %v895
      %v904 = vsel %vm258, %v896, 0.0
      %905 = vadd.xlane.f32.xlu0 %v904
      %v906 = vpop.xlane.xlu0 %905
      %v907 = vsel %vm258, %v897, 0.0
      %908 = vadd.xlane.f32.xlu0 %v907
      %v909 = vpop.xlane.xlu0 %908
      %v910 = vsel %vm258, %v898, 0.0
      %911 = vadd.xlane.f32.xlu0 %v910
      %v912 = vpop.xlane.xlu0 %911
      %v913 = vsel %vm258, %v899, 0.0
      %914 = vadd.xlane.f32.xlu0 %v913
      %v915 = vpop.xlane.xlu0 %914
      %v916 = vsel %vm258, %v900, 0.0
      %917 = vadd.xlane.f32.xlu0 %v916
      %v918 = vpop.xlane.xlu0 %917
      %v919 = vsel %vm258, %v901, 0.0
      %920 = vadd.xlane.f32.xlu0 %v919
      %v921 = vpop.xlane.xlu0 %920
      %v922 = vsel %vm258, %v902, 0.0
      %923 = vadd.xlane.f32.xlu0 %v922
      %v924 = vpop.xlane.xlu0 %923
      %v925 = vsel %vm258, %v903, 0.0
      %926 = vadd.xlane.f32.xlu0 %v925
      %v927 = vpop.xlane.xlu0 %926
      %v928 = vmul.f32 %v866, %v906
      %v929 = vmul.f32 %v869, %v909
      %v930 = vmul.f32 %v872, %v912
      %v931 = vmul.f32 %v875, %v915
      %v932 = vmul.f32 %v878, %v918
      %v933 = vmul.f32 %v881, %v921
      %v934 = vmul.f32 %v884, %v924
      %v935 = vmul.f32 %v887, %v927
      %v944 = vperm.slane %v928, %v710
      %v945 = vperm.slane %v929, %v710
      %v946 = vperm.slane %v930, %v710
      %v947 = vperm.slane %v931, %v710
      %v948 = vperm.slane %v932, %v710
      %v949 = vperm.slane %v933, %v710
      %v950 = vperm.slane %v934, %v710
      %v951 = vperm.slane %v935, %v710
      %v952 = vsel %vm595, %v945, %v944
      %v953 = vsel %vm597, %v946, %v952
      %v954 = vsel %vm599, %v947, %v953
      %v955 = vsel %vm601, %v948, %v954
      %v956 = vsel %vm603, %v949, %v955
      %v957 = vsel %vm605, %v950, %v956
      %v958 = vsel %vm607, %v951, %v957
      %v960 = vsel %vm727, %v958, 0.0
      %961 = vadd.xlane.f32.xlu0 %v960
      %v962 = vpop.xlane.xlu0 %961
      %v963 = vadd.f32 %v847, %v962
      %v964 = vperm.slane %v242, 3
      %v965 = vperm.slane %v243, 3
      %v966 = vperm.slane %v244, 3
      %v967 = vperm.slane %v245, 3
      %v968 = vperm.slane %v246, 3
      %v969 = vperm.slane %v247, 3
      %v970 = vperm.slane %v248, 3
      %v971 = vperm.slane %v249, 3
      %v972 = vmul.f32 %v407, %v964
      %v973 = vmul.f32 %v408, %v965
      %v974 = vmul.f32 %v409, %v966
      %v975 = vmul.f32 %v410, %v967
      %v976 = vmul.f32 %v411, %v968
      %v977 = vmul.f32 %v412, %v969
      %v978 = vmul.f32 %v413, %v970
      %v979 = vmul.f32 %v414, %v971
      %v980 = vsel %vm258, %v972, 0.0
      %981 = vadd.xlane.f32.xlu0 %v980
      %v982 = vpop.xlane.xlu0 %981
      %v983 = vsel %vm258, %v973, 0.0
      %984 = vadd.xlane.f32.xlu0 %v983
      %v985 = vpop.xlane.xlu0 %984
      %v986 = vsel %vm258, %v974, 0.0
      %987 = vadd.xlane.f32.xlu0 %v986
      %v988 = vpop.xlane.xlu0 %987
      %v989 = vsel %vm258, %v975, 0.0
      %990 = vadd.xlane.f32.xlu0 %v989
      %v991 = vpop.xlane.xlu0 %990
      %v992 = vsel %vm258, %v976, 0.0
      %993 = vadd.xlane.f32.xlu0 %v992
      %v994 = vpop.xlane.xlu0 %993
      %v995 = vsel %vm258, %v977, 0.0
      %996 = vadd.xlane.f32.xlu0 %v995
      %v997 = vpop.xlane.xlu0 %996
      %v998 = vsel %vm258, %v978, 0.0
      %999 = vadd.xlane.f32.xlu0 %v998
      %v1000 = vpop.xlane.xlu0 %999
      %v1001 = vsel %vm258, %v979, 0.0
      %1002 = vadd.xlane.f32.xlu0 %v1001
      %v1003 = vpop.xlane.xlu0 %1002
      %v1004 = vperm.slane %v407, 3
      %v1005 = vperm.slane %v408, 3
      %v1006 = vperm.slane %v409, 3
      %v1007 = vperm.slane %v410, 3
      %v1008 = vperm.slane %v411, 3
      %v1009 = vperm.slane %v412, 3
      %v1010 = vperm.slane %v413, 3
      %v1011 = vperm.slane %v414, 3
      %v1012 = vmul.f32 %v419, %v1004
      %v1013 = vmul.f32 %v420, %v1005
      %v1014 = vmul.f32 %v421, %v1006
      %v1015 = vmul.f32 %v422, %v1007
      %v1016 = vmul.f32 %v423, %v1008
      %v1017 = vmul.f32 %v424, %v1009
      %v1018 = vmul.f32 %v425, %v1010
      %v1019 = vmul.f32 %v426, %v1011
      %v1020 = vsel %vm258, %v1012, 0.0
      %1021 = vadd.xlane.f32.xlu0 %v1020
      %v1022 = vpop.xlane.xlu0 %1021
      %v1023 = vsel %vm258, %v1013, 0.0
      %1024 = vadd.xlane.f32.xlu0 %v1023
      %v1025 = vpop.xlane.xlu0 %1024
      %v1026 = vsel %vm258, %v1014, 0.0
      %1027 = vadd.xlane.f32.xlu0 %v1026
      %v1028 = vpop.xlane.xlu0 %1027
      %v1029 = vsel %vm258, %v1015, 0.0
      %1030 = vadd.xlane.f32.xlu0 %v1029
      %v1031 = vpop.xlane.xlu0 %1030
      %v1032 = vsel %vm258, %v1016, 0.0
      %1033 = vadd.xlane.f32.xlu0 %v1032
      %v1034 = vpop.xlane.xlu0 %1033
      %v1035 = vsel %vm258, %v1017, 0.0
      %1036 = vadd.xlane.f32.xlu0 %v1035
      %v1037 = vpop.xlane.xlu0 %1036
      %v1038 = vsel %vm258, %v1018, 0.0
      %1039 = vadd.xlane.f32.xlu0 %v1038
      %v1040 = vpop.xlane.xlu0 %1039
      %v1041 = vsel %vm258, %v1019, 0.0
      %1042 = vadd.xlane.f32.xlu0 %v1041
      %v1043 = vpop.xlane.xlu0 %1042
      %v1044 = vmul.f32 %v982, %v1022
      %v1045 = vmul.f32 %v985, %v1025
      %v1046 = vmul.f32 %v988, %v1028
      %v1047 = vmul.f32 %v991, %v1031
      %v1048 = vmul.f32 %v994, %v1034
      %v1049 = vmul.f32 %v997, %v1037
      %v1050 = vmul.f32 %v1000, %v1040
      %v1051 = vmul.f32 %v1003, %v1043
      %v1060 = vperm.slane %v1044, %v710
      %v1061 = vperm.slane %v1045, %v710
      %v1062 = vperm.slane %v1046, %v710
      %v1063 = vperm.slane %v1047, %v710
      %v1064 = vperm.slane %v1048, %v710
      %v1065 = vperm.slane %v1049, %v710
      %v1066 = vperm.slane %v1050, %v710
      %v1067 = vperm.slane %v1051, %v710
      %v1068 = vsel %vm595, %v1061, %v1060
      %v1069 = vsel %vm597, %v1062, %v1068
      %v1070 = vsel %vm599, %v1063, %v1069
      %v1071 = vsel %vm601, %v1064, %v1070
      %v1072 = vsel %vm603, %v1065, %v1071
      %v1073 = vsel %vm605, %v1066, %v1072
      %v1074 = vsel %vm607, %v1067, %v1073
      %v1076 = vsel %vm727, %v1074, 0.0
      %1077 = vadd.xlane.f32.xlu0 %v1076
      %v1078 = vpop.xlane.xlu0 %1077
      %v1079 = vadd.f32 %v963, %v1078
      %v1080 = vperm.slane %v242, 4
      %v1081 = vperm.slane %v243, 4
      %v1082 = vperm.slane %v244, 4
      %v1083 = vperm.slane %v245, 4
      %v1084 = vperm.slane %v246, 4
      %v1085 = vperm.slane %v247, 4
      %v1086 = vperm.slane %v248, 4
      %v1087 = vperm.slane %v249, 4
      %v1088 = vmul.f32 %v407, %v1080
      %v1089 = vmul.f32 %v408, %v1081
      %v1090 = vmul.f32 %v409, %v1082
      %v1091 = vmul.f32 %v410, %v1083
      %v1092 = vmul.f32 %v411, %v1084
      %v1093 = vmul.f32 %v412, %v1085
      %v1094 = vmul.f32 %v413, %v1086
      %v1095 = vmul.f32 %v414, %v1087
      %v1096 = vsel %vm258, %v1088, 0.0
      %1097 = vadd.xlane.f32.xlu0 %v1096
      %v1098 = vpop.xlane.xlu0 %1097
      %v1099 = vsel %vm258, %v1089, 0.0
      %1100 = vadd.xlane.f32.xlu0 %v1099
      %v1101 = vpop.xlane.xlu0 %1100
      %v1102 = vsel %vm258, %v1090, 0.0
      %1103 = vadd.xlane.f32.xlu0 %v1102
      %v1104 = vpop.xlane.xlu0 %1103
      %v1105 = vsel %vm258, %v1091, 0.0
      %1106 = vadd.xlane.f32.xlu0 %v1105
      %v1107 = vpop.xlane.xlu0 %1106
      %v1108 = vsel %vm258, %v1092, 0.0
      %1109 = vadd.xlane.f32.xlu0 %v1108
      %v1110 = vpop.xlane.xlu0 %1109
      %v1111 = vsel %vm258, %v1093, 0.0
      %1112 = vadd.xlane.f32.xlu0 %v1111
      %v1113 = vpop.xlane.xlu0 %1112
      %v1114 = vsel %vm258, %v1094, 0.0
      %1115 = vadd.xlane.f32.xlu0 %v1114
      %v1116 = vpop.xlane.xlu0 %1115
      %v1117 = vsel %vm258, %v1095, 0.0
      %1118 = vadd.xlane.f32.xlu0 %v1117
      %v1119 = vpop.xlane.xlu0 %1118
      %v1120 = vperm.slane %v407, 4
      %v1121 = vperm.slane %v408, 4
      %v1122 = vperm.slane %v409, 4
      %v1123 = vperm.slane %v410, 4
      %v1124 = vperm.slane %v411, 4
      %v1125 = vperm.slane %v412, 4
      %v1126 = vperm.slane %v413, 4
      %v1127 = vperm.slane %v414, 4
      %v1128 = vmul.f32 %v419, %v1120
      %v1129 = vmul.f32 %v420, %v1121
      %v1130 = vmul.f32 %v421, %v1122
      %v1131 = vmul.f32 %v422, %v1123
      %v1132 = vmul.f32 %v423, %v1124
      %v1133 = vmul.f32 %v424, %v1125
      %v1134 = vmul.f32 %v425, %v1126
      %v1135 = vmul.f32 %v426, %v1127
      %v1136 = vsel %vm258, %v1128, 0.0
      %1137 = vadd.xlane.f32.xlu0 %v1136
      %v1138 = vpop.xlane.xlu0 %1137
      %v1139 = vsel %vm258, %v1129, 0.0
      %1140 = vadd.xlane.f32.xlu0 %v1139
      %v1141 = vpop.xlane.xlu0 %1140
      %v1142 = vsel %vm258, %v1130, 0.0
      %1143 = vadd.xlane.f32.xlu0 %v1142
      %v1144 = vpop.xlane.xlu0 %1143
      %v1145 = vsel %vm258, %v1131, 0.0
      %1146 = vadd.xlane.f32.xlu0 %v1145
      %v1147 = vpop.xlane.xlu0 %1146
      %v1148 = vsel %vm258, %v1132, 0.0
      %1149 = vadd.xlane.f32.xlu0 %v1148
      %v1150 = vpop.xlane.xlu0 %1149
      %v1151 = vsel %vm258, %v1133, 0.0
      %1152 = vadd.xlane.f32.xlu0 %v1151
      %v1153 = vpop.xlane.xlu0 %1152
      %v1154 = vsel %vm258, %v1134, 0.0
      %1155 = vadd.xlane.f32.xlu0 %v1154
      %v1156 = vpop.xlane.xlu0 %1155
      %v1157 = vsel %vm258, %v1135, 0.0
      %1158 = vadd.xlane.f32.xlu0 %v1157
      %v1159 = vpop.xlane.xlu0 %1158
      %v1160 = vmul.f32 %v1098, %v1138
      %v1161 = vmul.f32 %v1101, %v1141
      %v1162 = vmul.f32 %v1104, %v1144
      %v1163 = vmul.f32 %v1107, %v1147
      %v1164 = vmul.f32 %v1110, %v1150
      %v1165 = vmul.f32 %v1113, %v1153
      %v1166 = vmul.f32 %v1116, %v1156
      %v1167 = vmul.f32 %v1119, %v1159
      %v1176 = vperm.slane %v1160, %v710
      %v1177 = vperm.slane %v1161, %v710
      %v1178 = vperm.slane %v1162, %v710
      %v1179 = vperm.slane %v1163, %v710
      %v1180 = vperm.slane %v1164, %v710
      %v1181 = vperm.slane %v1165, %v710
      %v1182 = vperm.slane %v1166, %v710
      %v1183 = vperm.slane %v1167, %v710
      %v1184 = vsel %vm595, %v1177, %v1176
      %v1185 = vsel %vm597, %v1178, %v1184
      %v1186 = vsel %vm599, %v1179, %v1185
      %v1187 = vsel %vm601, %v1180, %v1186
      %v1188 = vsel %vm603, %v1181, %v1187
      %v1189 = vsel %vm605, %v1182, %v1188
      %v1190 = vsel %vm607, %v1183, %v1189
      %v1192 = vsel %vm727, %v1190, 0.0
      %1193 = vadd.xlane.f32.xlu0 %v1192
      %v1194 = vpop.xlane.xlu0 %1193
      %v1195 = vadd.f32 %v1079, %v1194
      %v1196 = vperm.slane %v242, 5
      %v1197 = vperm.slane %v243, 5
      %v1198 = vperm.slane %v244, 5
      %v1199 = vperm.slane %v245, 5
      %v1200 = vperm.slane %v246, 5
      %v1201 = vperm.slane %v247, 5
      %v1202 = vperm.slane %v248, 5
      %v1203 = vperm.slane %v249, 5
      %v1204 = vmul.f32 %v407, %v1196
      %v1205 = vmul.f32 %v408, %v1197
      %v1206 = vmul.f32 %v409, %v1198
      %v1207 = vmul.f32 %v410, %v1199
      %v1208 = vmul.f32 %v411, %v1200
      %v1209 = vmul.f32 %v412, %v1201
      %v1210 = vmul.f32 %v413, %v1202
      %v1211 = vmul.f32 %v414, %v1203
      %v1212 = vsel %vm258, %v1204, 0.0
      %1213 = vadd.xlane.f32.xlu0 %v1212
      %v1214 = vpop.xlane.xlu0 %1213
      %v1215 = vsel %vm258, %v1205, 0.0
      %1216 = vadd.xlane.f32.xlu0 %v1215
      %v1217 = vpop.xlane.xlu0 %1216
      %v1218 = vsel %vm258, %v1206, 0.0
      %1219 = vadd.xlane.f32.xlu0 %v1218
      %v1220 = vpop.xlane.xlu0 %1219
      %v1221 = vsel %vm258, %v1207, 0.0
      %1222 = vadd.xlane.f32.xlu0 %v1221
      %v1223 = vpop.xlane.xlu0 %1222
      %v1224 = vsel %vm258, %v1208, 0.0
      %1225 = vadd.xlane.f32.xlu0 %v1224
      %v1226 = vpop.xlane.xlu0 %1225
      %v1227 = vsel %vm258, %v1209, 0.0
      %1228 = vadd.xlane.f32.xlu0 %v1227
      %v1229 = vpop.xlane.xlu0 %1228
      %v1230 = vsel %vm258, %v1210, 0.0
      %1231 = vadd.xlane.f32.xlu0 %v1230
      %v1232 = vpop.xlane.xlu0 %1231
      %v1233 = vsel %vm258, %v1211, 0.0
      %1234 = vadd.xlane.f32.xlu0 %v1233
      %v1235 = vpop.xlane.xlu0 %1234
      %v1236 = vperm.slane %v407, 5
      %v1237 = vperm.slane %v408, 5
      %v1238 = vperm.slane %v409, 5
      %v1239 = vperm.slane %v410, 5
      %v1240 = vperm.slane %v411, 5
      %v1241 = vperm.slane %v412, 5
      %v1242 = vperm.slane %v413, 5
      %v1243 = vperm.slane %v414, 5
      %v1244 = vmul.f32 %v419, %v1236
      %v1245 = vmul.f32 %v420, %v1237
      %v1246 = vmul.f32 %v421, %v1238
      %v1247 = vmul.f32 %v422, %v1239
      %v1248 = vmul.f32 %v423, %v1240
      %v1249 = vmul.f32 %v424, %v1241
      %v1250 = vmul.f32 %v425, %v1242
      %v1251 = vmul.f32 %v426, %v1243
      %v1252 = vsel %vm258, %v1244, 0.0
      %1253 = vadd.xlane.f32.xlu0 %v1252
      %v1254 = vpop.xlane.xlu0 %1253
      %v1255 = vsel %vm258, %v1245, 0.0
      %1256 = vadd.xlane.f32.xlu0 %v1255
      %v1257 = vpop.xlane.xlu0 %1256
      %v1258 = vsel %vm258, %v1246, 0.0
      %1259 = vadd.xlane.f32.xlu0 %v1258
      %v1260 = vpop.xlane.xlu0 %1259
      %v1261 = vsel %vm258, %v1247, 0.0
      %1262 = vadd.xlane.f32.xlu0 %v1261
      %v1263 = vpop.xlane.xlu0 %1262
      %v1264 = vsel %vm258, %v1248, 0.0
      %1265 = vadd.xlane.f32.xlu0 %v1264
      %v1266 = vpop.xlane.xlu0 %1265
      %v1267 = vsel %vm258, %v1249, 0.0
      %1268 = vadd.xlane.f32.xlu0 %v1267
      %v1269 = vpop.xlane.xlu0 %1268
      %v1270 = vsel %vm258, %v1250, 0.0
      %1271 = vadd.xlane.f32.xlu0 %v1270
      %v1272 = vpop.xlane.xlu0 %1271
      %v1273 = vsel %vm258, %v1251, 0.0
      %1274 = vadd.xlane.f32.xlu0 %v1273
      %v1275 = vpop.xlane.xlu0 %1274
      %v1276 = vmul.f32 %v1214, %v1254
      %v1277 = vmul.f32 %v1217, %v1257
      %v1278 = vmul.f32 %v1220, %v1260
      %v1279 = vmul.f32 %v1223, %v1263
      %v1280 = vmul.f32 %v1226, %v1266
      %v1281 = vmul.f32 %v1229, %v1269
      %v1282 = vmul.f32 %v1232, %v1272
      %v1283 = vmul.f32 %v1235, %v1275
      %v1292 = vperm.slane %v1276, %v710
      %v1293 = vperm.slane %v1277, %v710
      %v1294 = vperm.slane %v1278, %v710
      %v1295 = vperm.slane %v1279, %v710
      %v1296 = vperm.slane %v1280, %v710
      %v1297 = vperm.slane %v1281, %v710
      %v1298 = vperm.slane %v1282, %v710
      %v1299 = vperm.slane %v1283, %v710
      %v1300 = vsel %vm595, %v1293, %v1292
      %v1301 = vsel %vm597, %v1294, %v1300
      %v1302 = vsel %vm599, %v1295, %v1301
      %v1303 = vsel %vm601, %v1296, %v1302
      %v1304 = vsel %vm603, %v1297, %v1303
      %v1305 = vsel %vm605, %v1298, %v1304
      %v1306 = vsel %vm607, %v1299, %v1305
      %v1308 = vsel %vm727, %v1306, 0.0
      %1309 = vadd.xlane.f32.xlu0 %v1308
      %v1310 = vpop.xlane.xlu0 %1309
      %v1311 = vadd.f32 %v1195, %v1310
      %v1312 = vperm.slane %v242, 6
      %v1313 = vperm.slane %v243, 6
      %v1314 = vperm.slane %v244, 6
      %v1315 = vperm.slane %v245, 6
      %v1316 = vperm.slane %v246, 6
      %v1317 = vperm.slane %v247, 6
      %v1318 = vperm.slane %v248, 6
      %v1319 = vperm.slane %v249, 6
      %v1320 = vmul.f32 %v407, %v1312
      %v1321 = vmul.f32 %v408, %v1313
      %v1322 = vmul.f32 %v409, %v1314
      %v1323 = vmul.f32 %v410, %v1315
      %v1324 = vmul.f32 %v411, %v1316
      %v1325 = vmul.f32 %v412, %v1317
      %v1326 = vmul.f32 %v413, %v1318
      %v1327 = vmul.f32 %v414, %v1319
      %v1328 = vsel %vm258, %v1320, 0.0
      %1329 = vadd.xlane.f32.xlu0 %v1328
      %v1330 = vpop.xlane.xlu0 %1329
      %v1331 = vsel %vm258, %v1321, 0.0
      %1332 = vadd.xlane.f32.xlu0 %v1331
      %v1333 = vpop.xlane.xlu0 %1332
      %v1334 = vsel %vm258, %v1322, 0.0
      %1335 = vadd.xlane.f32.xlu0 %v1334
      %v1336 = vpop.xlane.xlu0 %1335
      %v1337 = vsel %vm258, %v1323, 0.0
      %1338 = vadd.xlane.f32.xlu0 %v1337
      %v1339 = vpop.xlane.xlu0 %1338
      %v1340 = vsel %vm258, %v1324, 0.0
      %1341 = vadd.xlane.f32.xlu0 %v1340
      %v1342 = vpop.xlane.xlu0 %1341
      %v1343 = vsel %vm258, %v1325, 0.0
      %1344 = vadd.xlane.f32.xlu0 %v1343
      %v1345 = vpop.xlane.xlu0 %1344
      %v1346 = vsel %vm258, %v1326, 0.0
      %1347 = vadd.xlane.f32.xlu0 %v1346
      %v1348 = vpop.xlane.xlu0 %1347
      %v1349 = vsel %vm258, %v1327, 0.0
      %1350 = vadd.xlane.f32.xlu0 %v1349
      %v1351 = vpop.xlane.xlu0 %1350
      %v1352 = vperm.slane %v407, 6
      %v1353 = vperm.slane %v408, 6
      %v1354 = vperm.slane %v409, 6
      %v1355 = vperm.slane %v410, 6
      %v1356 = vperm.slane %v411, 6
      %v1357 = vperm.slane %v412, 6
      %v1358 = vperm.slane %v413, 6
      %v1359 = vperm.slane %v414, 6
      %v1360 = vmul.f32 %v419, %v1352
      %v1361 = vmul.f32 %v420, %v1353
      %v1362 = vmul.f32 %v421, %v1354
      %v1363 = vmul.f32 %v422, %v1355
      %v1364 = vmul.f32 %v423, %v1356
      %v1365 = vmul.f32 %v424, %v1357
      %v1366 = vmul.f32 %v425, %v1358
      %v1367 = vmul.f32 %v426, %v1359
      %v1368 = vsel %vm258, %v1360, 0.0
      %1369 = vadd.xlane.f32.xlu0 %v1368
      %v1370 = vpop.xlane.xlu0 %1369
      %v1371 = vsel %vm258, %v1361, 0.0
      %1372 = vadd.xlane.f32.xlu0 %v1371
      %v1373 = vpop.xlane.xlu0 %1372
      %v1374 = vsel %vm258, %v1362, 0.0
      %1375 = vadd.xlane.f32.xlu0 %v1374
      %v1376 = vpop.xlane.xlu0 %1375
      %v1377 = vsel %vm258, %v1363, 0.0
      %1378 = vadd.xlane.f32.xlu0 %v1377
      %v1379 = vpop.xlane.xlu0 %1378
      %v1380 = vsel %vm258, %v1364, 0.0
      %1381 = vadd.xlane.f32.xlu0 %v1380
      %v1382 = vpop.xlane.xlu0 %1381
      %v1383 = vsel %vm258, %v1365, 0.0
      %1384 = vadd.xlane.f32.xlu0 %v1383
      %v1385 = vpop.xlane.xlu0 %1384
      %v1386 = vsel %vm258, %v1366, 0.0
      %1387 = vadd.xlane.f32.xlu0 %v1386
      %v1388 = vpop.xlane.xlu0 %1387
      %v1389 = vsel %vm258, %v1367, 0.0
      %1390 = vadd.xlane.f32.xlu0 %v1389
      %v1391 = vpop.xlane.xlu0 %1390
      %v1392 = vmul.f32 %v1330, %v1370
      %v1393 = vmul.f32 %v1333, %v1373
      %v1394 = vmul.f32 %v1336, %v1376
      %v1395 = vmul.f32 %v1339, %v1379
      %v1396 = vmul.f32 %v1342, %v1382
      %v1397 = vmul.f32 %v1345, %v1385
      %v1398 = vmul.f32 %v1348, %v1388
      %v1399 = vmul.f32 %v1351, %v1391
      %v1408 = vperm.slane %v1392, %v710
      %v1409 = vperm.slane %v1393, %v710
      %v1410 = vperm.slane %v1394, %v710
      %v1411 = vperm.slane %v1395, %v710
      %v1412 = vperm.slane %v1396, %v710
      %v1413 = vperm.slane %v1397, %v710
      %v1414 = vperm.slane %v1398, %v710
      %v1415 = vperm.slane %v1399, %v710
      %v1416 = vsel %vm595, %v1409, %v1408
      %v1417 = vsel %vm597, %v1410, %v1416
      %v1418 = vsel %vm599, %v1411, %v1417
      %v1419 = vsel %vm601, %v1412, %v1418
      %v1420 = vsel %vm603, %v1413, %v1419
      %v1421 = vsel %vm605, %v1414, %v1420
      %v1422 = vsel %vm607, %v1415, %v1421
      %v1424 = vsel %vm727, %v1422, 0.0
      %1425 = vadd.xlane.f32.xlu0 %v1424
      %v1426 = vpop.xlane.xlu0 %1425
      %v1427 = vadd.f32 %v1311, %v1426
      %v1428 = vperm.slane %v242, 7
      %v1429 = vperm.slane %v243, 7
      %v1430 = vperm.slane %v244, 7
      %v1431 = vperm.slane %v245, 7
      %v1432 = vperm.slane %v246, 7
      %v1433 = vperm.slane %v247, 7
      %v1434 = vperm.slane %v248, 7
      %v1435 = vperm.slane %v249, 7
      %v1436 = vmul.f32 %v407, %v1428
      %v1437 = vmul.f32 %v408, %v1429
      %v1438 = vmul.f32 %v409, %v1430
      %v1439 = vmul.f32 %v410, %v1431
      %v1440 = vmul.f32 %v411, %v1432
      %v1441 = vmul.f32 %v412, %v1433
      %v1442 = vmul.f32 %v413, %v1434
      %v1443 = vmul.f32 %v414, %v1435
      %v1444 = vsel %vm258, %v1436, 0.0
      %1445 = vadd.xlane.f32.xlu0 %v1444
      %v1446 = vpop.xlane.xlu0 %1445
      %v1447 = vsel %vm258, %v1437, 0.0
      %1448 = vadd.xlane.f32.xlu0 %v1447
      %v1449 = vpop.xlane.xlu0 %1448
      %v1450 = vsel %vm258, %v1438, 0.0
      %1451 = vadd.xlane.f32.xlu0 %v1450
      %v1452 = vpop.xlane.xlu0 %1451
      %v1453 = vsel %vm258, %v1439, 0.0
      %1454 = vadd.xlane.f32.xlu0 %v1453
      %v1455 = vpop.xlane.xlu0 %1454
      %v1456 = vsel %vm258, %v1440, 0.0
      %1457 = vadd.xlane.f32.xlu0 %v1456
      %v1458 = vpop.xlane.xlu0 %1457
      %v1459 = vsel %vm258, %v1441, 0.0
      %1460 = vadd.xlane.f32.xlu0 %v1459
      %v1461 = vpop.xlane.xlu0 %1460
      %v1462 = vsel %vm258, %v1442, 0.0
      %1463 = vadd.xlane.f32.xlu0 %v1462
      %v1464 = vpop.xlane.xlu0 %1463
      %v1465 = vsel %vm258, %v1443, 0.0
      %1466 = vadd.xlane.f32.xlu0 %v1465
      %v1467 = vpop.xlane.xlu0 %1466
      %v1468 = vperm.slane %v407, 7
      %v1469 = vperm.slane %v408, 7
      %v1470 = vperm.slane %v409, 7
      %v1471 = vperm.slane %v410, 7
      %v1472 = vperm.slane %v411, 7
      %v1473 = vperm.slane %v412, 7
      %v1474 = vperm.slane %v413, 7
      %v1475 = vperm.slane %v414, 7
      %v1476 = vmul.f32 %v419, %v1468
      %v1477 = vmul.f32 %v420, %v1469
      %v1478 = vmul.f32 %v421, %v1470
      %v1479 = vmul.f32 %v422, %v1471
      %v1480 = vmul.f32 %v423, %v1472
      %v1481 = vmul.f32 %v424, %v1473
      %v1482 = vmul.f32 %v425, %v1474
      %v1483 = vmul.f32 %v426, %v1475
      %v1484 = vsel %vm258, %v1476, 0.0
      %1485 = vadd.xlane.f32.xlu0 %v1484
      %v1486 = vpop.xlane.xlu0 %1485
      %v1487 = vsel %vm258, %v1477, 0.0
      %1488 = vadd.xlane.f32.xlu0 %v1487
      %v1489 = vpop.xlane.xlu0 %1488
      %v1490 = vsel %vm258, %v1478, 0.0
      %1491 = vadd.xlane.f32.xlu0 %v1490
      %v1492 = vpop.xlane.xlu0 %1491
      %v1493 = vsel %vm258, %v1479, 0.0
      %1494 = vadd.xlane.f32.xlu0 %v1493
      %v1495 = vpop.xlane.xlu0 %1494
      %v1496 = vsel %vm258, %v1480, 0.0
      %1497 = vadd.xlane.f32.xlu0 %v1496
      %v1498 = vpop.xlane.xlu0 %1497
      %v1499 = vsel %vm258, %v1481, 0.0
      %1500 = vadd.xlane.f32.xlu0 %v1499
      %v1501 = vpop.xlane.xlu0 %1500
      %v1502 = vsel %vm258, %v1482, 0.0
      %1503 = vadd.xlane.f32.xlu0 %v1502
      %v1504 = vpop.xlane.xlu0 %1503
      %v1505 = vsel %vm258, %v1483, 0.0
      %1506 = vadd.xlane.f32.xlu0 %v1505
      %v1507 = vpop.xlane.xlu0 %1506
      %v1508 = vmul.f32 %v1446, %v1486
      %v1509 = vmul.f32 %v1449, %v1489
      %v1510 = vmul.f32 %v1452, %v1492
      %v1511 = vmul.f32 %v1455, %v1495
      %v1512 = vmul.f32 %v1458, %v1498
      %v1513 = vmul.f32 %v1461, %v1501
      %v1514 = vmul.f32 %v1464, %v1504
      %v1515 = vmul.f32 %v1467, %v1507
      %v1524 = vperm.slane %v1508, %v710
      %v1525 = vperm.slane %v1509, %v710
      %v1526 = vperm.slane %v1510, %v710
      %v1527 = vperm.slane %v1511, %v710
      %v1528 = vperm.slane %v1512, %v710
      %v1529 = vperm.slane %v1513, %v710
      %v1530 = vperm.slane %v1514, %v710
      %v1531 = vperm.slane %v1515, %v710
      %v1532 = vsel %vm595, %v1525, %v1524
      %v1533 = vsel %vm597, %v1526, %v1532
      %v1534 = vsel %vm599, %v1527, %v1533
      %v1535 = vsel %vm601, %v1528, %v1534
      %v1536 = vsel %vm603, %v1529, %v1535
      %v1537 = vsel %vm605, %v1530, %v1536
      %v1538 = vsel %vm607, %v1531, %v1537
      %v1540 = vsel %vm727, %v1538, 0.0
      %1541 = vadd.xlane.f32.xlu0 %v1540
      %v1542 = vpop.xlane.xlu0 %1541
      %v1543 = vadd.f32 %v1427, %v1542
      %v1544 = vsub.f32 0.0, %v1543
      %v1545 = vadd.f32 %v612, %v1544
      %v1546 = vld [vmem:[%s237] sm:$0xff]
      %v1547 = vadd.f32 %v1545, %v1546
      %vm1548 = vcmask 7168
      %1549 = vst.msk [vmem:[%s241] sm:$0xff] %vm1548, %v1547
      %p1550 = scmp.lt.s32.totalorder %s16, 2
      %s1551 = scalar_select %p1550, %s16, 2
      %s1552 = smul.addr %s1551, 8
      %s1553 = scalar_lea.vmem %s5, %s1552
      // Predicated region
      $region41: #{gmlfm_forward.1} parent=39 // pred_check
        %p1554 = pneg %p149
      $region42: #{gmlfm_forward.1} parent=39 // pred_check_branch
        %1556 = sbr.rel (%p1554) target = $region44
      $region43: #{gmlfm_forward.1} parent=39 // pred_region
        _
      $region44: #{gmlfm_forward.1} parent=39 // pred_fallthru
        _
    $region40: #{gmlfm_forward.1} parent=5 // pred_fallthru
      _
    %p1557 = scmp.le.s32.totalorder 2, %s11
    // Predicated region
    $region45: #{gmlfm_forward.1} parent=5 // pred_check
      %p1558 = pneg %p1557
    $region46: #{gmlfm_forward.1} parent=5 // pred_check_branch
      %1560 = sbr.rel (%p1558) target = $region48
    $region47: #{gmlfm_forward.1} parent=5 // pred_region
      %s1561 = ssub.s32 %s11, 2
      // Predicated region
      $region49: #{gmlfm_forward.1} parent=47 // pred_check
        %p1562 = pneg %p155
      $region50: #{gmlfm_forward.1} parent=47 // pred_check_branch
        %1564 = sbr.rel (%p1562) target = $region52
      $region51: #{gmlfm_forward.1} parent=47 // pred_region
        %p1565 = scmp.lt.s32.totalorder %s17, 2
        %s1566 = scalar_select %p1565, %s17, 2
        %s1567 = smul.addr %s1566, 8
        %s1568 = scalar_lea.vmem %s5, %s1567
      $region52: #{gmlfm_forward.1} parent=47 // pred_fallthru
        _
    $region48: #{gmlfm_forward.1} parent=5 // pred_fallthru
      _
  $region6: #{gmlfm_forward.1} parent=0 // loop_footer
    %s15 = sadd.s32 1, %s11
  $region7: #{gmlfm_forward.1} parent=0 // loop_footer_branch
    %10 = sbr.rel target = $region3
  $region8: #{gmlfm_forward.1} parent=0 // loop_exit
    _

</llo_original>
